<compile_context>
chip_gen: v7x
topology: tpu7x:2x2x1
jax: 0.10.0
libtpu: 0.0.40
codegen_flags: <defaults>
</compile_context>

<pallas_src>
import jax
import jax.numpy as jnp
import numpy as np
from jax.experimental import pallas as pl
from jax.experimental.pallas import tpu as pltpu


# ---------------------------------------------------------------------------
# Host-side helpers: selection matrices, VMEM sizing, row-tile choice.
# ---------------------------------------------------------------------------

def _compute_dtype(dtype):
    dt = np.dtype(dtype)
    if dt == np.dtype(jnp.bfloat16) or dt == np.dtype(np.float32):
        return dt
    return np.dtype(np.float32)


def _rh_full(Ht, hs):
    """(Ht, hs) 0/1: Rh[t, h] = 1 iff h*xs <= t < (h+1)*xs (all-zero rows = zero tail)."""
    xs = Ht // hs
    t = np.arange(Ht)[:, None]
    h = np.arange(hs)[None, :]
    return ((t >= h * xs) & (t < (h + 1) * xs)).astype(np.float32)


def _rwt_full(Wt, ws):
    """(ws, Wt) 0/1: RwT[v, w] = 1 iff v*ys <= w < (v+1)*ys."""
    ys = Wt // ws
    v = np.arange(ws)[:, None]
    w = np.arange(Wt)[None, :]
    return ((w >= v * ys) & (w < (v + 1) * ys)).astype(np.float32)


def _kron_row_select(Ht, hs, c_i, row_tile):
    """(n_row_tiles, c_i*row_tile, c_i*hs): per-row-tile block-diagonal row selection
    kron(I_C, Rh_tile) so the H-expansion is a single 2-D matmul with channels in M."""
    rh = _rh_full(Ht, hs)
    eye = np.eye(c_i, dtype=np.float32)
    n = Ht // row_tile
    return np.stack(
        [np.kron(eye, rh[r * row_tile:(r + 1) * row_tile]) for r in range(n)])


def _vmem_limit_bytes():
    """Generation-aware VMEM limit: ~85% of per-core capacity (leave compiler slack)."""
    try:
        cap = int(pltpu.get_tpu_info().vmem_capacity_bytes)
    except Exception:
        cap = 64 * 1024 * 1024
    return max(32 * 1024 * 1024, int(cap * 0.85))


def _pick_row_tile(Ht, sublane_req, fits):
    """Largest divisor of Ht, aligned to the dtype sublane multiple, under the budget."""
    divisors = [d for d in range(Ht, 0, -1) if Ht % d == 0]
    for req in (sublane_req, 8):
        ok = [d for d in divisors if d % req == 0]
        fit = [d for d in ok if fits(d)]
        if fit:
            return fit[0]                      # divisors listed largest first
    ok8 = [d for d in divisors if d % 8 == 0]
    return ok8[-1] if ok8 else Ht              # nothing fits / Ht < 8: fall back


# ---------------------------------------------------------------------------
# Fused forward pass.
# ---------------------------------------------------------------------------

def resize_to_same_size(*bottom, row_tile=None):
    """Resize every input to bottom[0]'s spatial size (nearest-neighbour block fill,
    zero tail) and concatenate along channels — one fused Pallas kernel."""
    tgt = bottom[0]
    B, _, Ht, Wt = (int(d) for d in tgt.shape)
    in_shapes = tuple(tuple(int(d) for d in x.shape) for x in bottom)
    for s in in_shapes:
        assert s[0] == B, "all inputs must share the batch dimension"
    c_total = int(sum(s[1] for s in in_shapes))
    out_dtype = tgt.dtype

    is_pass = [(s[2], s[3]) == (Ht, Wt) for s in in_shapes]

    vmem_limit = _vmem_limit_bytes()
    budget = int(vmem_limit * 0.6)             # double-buffered blocks + temporaries

    def step_bytes(th):
        osz = np.dtype(out_dtype).itemsize
        total = 2 * c_total * th * Wt * osz                      # out block (x2 buffers)
        for s, x, p in zip(in_shapes, bottom, is_pass):
            _, c_i, hs, ws = s
            isz = np.dtype(x.dtype).itemsize
            if p:
                total += 2 * c_i * th * Wt * isz                 # streamed pass-through
            else:
                csz = np.dtype(_compute_dtype(x.dtype)).itemsize
                total += 2 * c_i * hs * ws * isz                 # resident source
                total += 2 * (c_i * th) * (c_i * hs) * csz       # row-selection block
                total += 2 * ws * Wt * csz                       # resident RwT
                total += c_i * th * (Wt + ws) * 4                # f32 matmul temporaries
        return total

    if row_tile is None:
        req = max([max(1, 32 // np.dtype(out_dtype).itemsize)] +
                  [max(1, 32 // np.dtype(x.dtype).itemsize)
                   for x, p in zip(bottom, is_pass) if p])
        row_tile = _pick_row_tile(Ht, req, lambda th: step_bytes(th) <= budget)
    assert Ht % row_tile == 0, (Ht, row_tile)
    n_row_tiles = Ht // row_tile

    # ---- assemble call args, specs and the per-input plan ---------------------
    call_args, in_specs, plan = [], [], []
    const_cache = {}        # dedup host-precomputed selection matrices

    c_off = 0
    for x, s, p in zip(bottom, in_shapes, is_pass):
        _, c_i, hs, ws = s
        if p:
            arg = len(call_args)
            call_args.append(x)
            in_specs.append(
                pl.BlockSpec((1, c_i, row_tile, Wt), lambda b, r: (b, 0, r, 0)))
            plan.append(dict(kind="pass", arg=arg, c0=c_off, c=c_i))
        else:
            cdt = _compute_dtype(x.dtype)
            arg = len(call_args)
            # Free HBM reshape: channels pre-folded into the matmul M dimension.
            call_args.append(x.reshape(B, c_i * hs, ws))
            in_specs.append(
                pl.BlockSpec((1, c_i * hs, ws), lambda b, r: (b, 0, 0)))

            kkey = ("kron", c_i, hs, str(cdt))
            if kkey not in const_cache:
                const_cache[kkey] = len(call_args)
                call_args.append(
                    jnp.asarray(_kron_row_select(Ht, hs, c_i, row_tile), dtype=cdt))
                in_specs.append(
                    pl.BlockSpec((1, c_i * row_tile, c_i * hs), lambda b, r: (r, 0, 0)))

            wkey = ("rwt", ws, str(cdt))
            if wkey not in const_cache:
                const_cache[wkey] = len(call_args)
                call_args.append(jnp.asarray(_rwt_full(Wt, ws), dtype=cdt))
                in_specs.append(pl.BlockSpec((ws, Wt), lambda b, r: (0, 0)))

            plan.append(dict(kind="resize", arg=arg, kron=const_cache[kkey],
                             rwt=const_cache[wkey], c0=c_off, c=c_i, cdt=cdt))
        c_off += c_i

    n_args = len(call_args)

    # ---- the fused kernel ------------------------------------------------------
    def kernel(*refs):
        o_ref = refs[n_args]
        for item in plan:                                   # unrolled at trace time
            c0, c_i = item["c0"], item["c"]
            if item["kind"] == "pass":
                # Stream-copy this input's row tile into its channel slab.
                o_ref[0, c0:c0 + c_i] = refs[item["arg"]][0].astype(o_ref.dtype)
            else:
                cdt = item["cdt"]
                xm = refs[item["arg"]][0].astype(cdt)       # (C*hs, ws)
                sel = refs[item["kron"]][0]                 # (C*TH, C*hs) 0/1, this tile
                rwt = refs[item["rwt"]][...]                # (ws, Wt)     0/1, resident
                y = jnp.dot(sel, xm,
                            preferred_element_type=jnp.float32).astype(cdt)  # (C*TH, ws)
                y = jnp.dot(y, rwt,
                            preferred_element_type=jnp.float32)              # (C*TH, Wt)
                o_ref[0, c0:c0 + c_i] = (
                    y.reshape(c_i, row_tile, Wt).astype(o_ref.dtype))

    return pl.pallas_call(
        kernel,
        out_shape=jax.ShapeDtypeStruct((B, c_total, Ht, Wt), out_dtype),
        grid=(B, n_row_tiles),
        in_specs=in_specs,
        out_specs=pl.BlockSpec((1, c_total, row_tile, Wt), lambda b, r: (b, 0, r, 0)),
        compiler_params=pltpu.CompilerParams(
            dimension_semantics=("parallel", "parallel"),
            vmem_limit_bytes=vmem_limit,
        ),
    )(*call_args)
    # TODO(synk): the module's stateful data_dict caching / clear() (detach_) has no
    # Pallas equivalent and is not needed for the functional forward pass.


# ---------------------------------------------------------------------------
# Reference + self-test.
# ---------------------------------------------------------------------------

def _reference_resize(x, target_hw):
    """Pure-numpy replica of simple_resize for correctness checking."""
    B, C, Hs, Ws = x.shape
    Ht, Wt = target_hw
    xs, ys = Ht // Hs, Wt // Ws
    out = np.zeros((B, C, Ht, Wt), dtype=np.float32)
    xn = np.asarray(x)
    for i in range(Hs):
        for j in range(Ws):
            out[:, :, i * xs:(i + 1) * xs, j * ys:(j + 1) * ys] = \
                xn[:, :, i, j][..., None, None]
    return out


def _bf16_exact(x):
    # Resized-path test data is bf16-quantised so the 0/1 selection matmuls are exact
    # under any MXU f32 pass count; the check then verifies pure indexing semantics.
    return x.astype(jnp.bfloat16).astype(jnp.float32)


if __name__ == "__main__":
    key = jax.random.PRNGKey(0)
    k0, k1, k2, k3, k4 = jax.random.split(key, 5)

    B, C = 2, 4
    x0 = jax.random.normal(k0, (B, C, 16, 16), dtype=jnp.float32)              # target
    x1 = _bf16_exact(jax.random.normal(k1, (B, C, 8, 8), dtype=jnp.float32))   # x2 upsample
    x2 = _bf16_exact(jax.random.normal(k2, (B, C, 4, 4), dtype=jnp.float32))   # x4 upsample
    x3 = jax.random.normal(k3, (B, C, 16, 16), dtype=jnp.float32)              # pass-through
    x4 = _bf16_exact(jax.random.normal(k4, (B, C, 6, 6), dtype=jnp.float32))   # zero tail

    ref = np.concatenate(
        [
            np.asarray(x0),
            _reference_resize(x1, (16, 16)),
            _reference_resize(x2, (16, 16)),
            np.asarray(x3),
            _reference_resize(x4, (16, 16)),
        ],
        axis=1,
    )

    # Auto row tile (single 16-row tile at this size).
    out = jax.block_until_ready(resize_to_same_size(x0, x1, x2, x3, x4))
    assert out.shape == (B, 5 * C, 16, 16), out.shape
    np.testing.assert_allclose(np.asarray(out), ref, rtol=1e-6, atol=1e-6)

    # Forced 8-row tile: exercises the per-row-tile selection slices (grid r > 0).
    out2 = jax.block_until_ready(resize_to_same_size(x0, x1, x2, x3, x4, row_tile=8))
    np.testing.assert_allclose(np.asarray(out2), ref, rtol=1e-6, atol=1e-6)

    print("KERNEL_OK")
</pallas_src>

<mosaic_0001>
module attributes {stable_mosaic.version = 11 : i64} {
  func.func @kernel(%arg0: i32, %arg1: i32, %arg2: memref<1x4x16x16xf32, #tpu.memory_space<vmem>>, %arg3: memref<1x32x8xf32, #tpu.memory_space<vmem>>, %arg4: memref<1x64x32xf32, #tpu.memory_space<vmem>>, %arg5: memref<8x16xf32, #tpu.memory_space<vmem>>, %arg6: memref<1x16x4xf32, #tpu.memory_space<vmem>>, %arg7: memref<1x64x16xf32, #tpu.memory_space<vmem>>, %arg8: memref<4x16xf32, #tpu.memory_space<vmem>>, %arg9: memref<1x4x16x16xf32, #tpu.memory_space<vmem>>, %arg10: memref<1x24x6xf32, #tpu.memory_space<vmem>>, %arg11: memref<1x64x24xf32, #tpu.memory_space<vmem>>, %arg12: memref<6x16xf32, #tpu.memory_space<vmem>>, %arg13: memref<1x20x16x16xf32, #tpu.memory_space<vmem>>) attributes {dimension_semantics = [#tpu.dimension_semantics<parallel>, #tpu.dimension_semantics<parallel>], iteration_bounds = array<i64: 2, 1>, scalar_prefetch = 0 : i64, scratch_operands = 0 : i64, tpu.core_type = #tpu.core_type<tc>, window_params = [{transform_indices = @transform_0, window_bounds = array<i64: 1, 4, 16, 16>}, {transform_indices = @transform_1, window_bounds = array<i64: 1, 32, 8>}, {transform_indices = @transform_2, window_bounds = array<i64: 1, 64, 32>}, {pipeline_mode = #tpu.pipeline_mode<synchronous>, transform_indices = @transform_3, window_bounds = array<i64: 8, 16>}, {transform_indices = @transform_4, window_bounds = array<i64: 1, 16, 4>}, {transform_indices = @transform_5, window_bounds = array<i64: 1, 64, 16>}, {pipeline_mode = #tpu.pipeline_mode<synchronous>, transform_indices = @transform_6, window_bounds = array<i64: 4, 16>}, {transform_indices = @transform_7, window_bounds = array<i64: 1, 4, 16, 16>}, {transform_indices = @transform_8, window_bounds = array<i64: 1, 24, 6>}, {transform_indices = @transform_9, window_bounds = array<i64: 1, 64, 24>}, {pipeline_mode = #tpu.pipeline_mode<synchronous>, transform_indices = @transform_10, window_bounds = array<i64: 6, 16>}, {transform_indices = @transform_11, window_bounds = array<i64: 1, 20, 16, 16>}]} {
    %c0 = arith.constant 0 : index
    %c0_0 = arith.constant 0 : index
    %c0_1 = arith.constant 0 : index
    %c0_2 = arith.constant 0 : index
    %0 = vector.load %arg2[%c0, %c0_0, %c0_1, %c0_2] : memref<1x4x16x16xf32, #tpu.memory_space<vmem>>, vector<1x4x16x16xf32>
    %1 = vector.shape_cast %0 : vector<1x4x16x16xf32> to vector<4x16x16xf32>
    %c0_3 = arith.constant 0 : index
    %c0_4 = arith.constant 0 : index
    %c0_5 = arith.constant 0 : index
    %c0_6 = arith.constant 0 : index
    %2 = vector.load %arg13[%c0_3, %c0_4, %c0_5, %c0_6] : memref<1x20x16x16xf32, #tpu.memory_space<vmem>>, vector<1x4x16x16xf32>
    %3 = vector.shape_cast %2 : vector<1x4x16x16xf32> to vector<4x16x16xf32>
    %4 = vector.shape_cast %1 : vector<4x16x16xf32> to vector<1x4x16x16xf32>
    tpu.vector_store %arg13[%c0_3, %c0_4, %c0_5, %c0_6], %4 {strides = array<i32>} : memref<1x20x16x16xf32, #tpu.memory_space<vmem>>, vector<1x4x16x16xf32>,
    %c0_7 = arith.constant 0 : index
    %c0_8 = arith.constant 0 : index
    %c0_9 = arith.constant 0 : index
    %5 = vector.load %arg3[%c0_7, %c0_8, %c0_9] : memref<1x32x8xf32, #tpu.memory_space<vmem>>, vector<1x32x8xf32>
    %6 = vector.shape_cast %5 : vector<1x32x8xf32> to vector<32x8xf32>
    %c0_10 = arith.constant 0 : index
    %c0_11 = arith.constant 0 : index
    %c0_12 = arith.constant 0 : index
    %7 = vector.load %arg4[%c0_10, %c0_11, %c0_12] : memref<1x64x32xf32, #tpu.memory_space<vmem>>, vector<1x64x32xf32>
    %8 = vector.shape_cast %7 : vector<1x64x32xf32> to vector<64x32xf32>
    %c0_13 = arith.constant 0 : index
    %c0_14 = arith.constant 0 : index
    %9 = vector.load %arg5[%c0_13, %c0_14] : memref<8x16xf32, #tpu.memory_space<vmem>>, vector<8x16xf32>
    %cst = arith.constant dense<0.000000e+00> : vector<64x8xf32>
    %10 = tpu.matmul %8, %6, %cst {dimension_numbers = #tpu.dot_dimension_numbers<[1], [0], [0], [1], [0, 0, 1, 1], [], []>} : vector<64x32xf32>, vector<32x8xf32>, vector<64x8xf32> -> vector<64x8xf32>
    %cst_15 = arith.constant dense<0.000000e+00> : vector<64x16xf32>
    %11 = tpu.matmul %10, %9, %cst_15 {dimension_numbers = #tpu.dot_dimension_numbers<[1], [0], [0], [1], [0, 0, 1, 1], [], []>} : vector<64x8xf32>, vector<8x16xf32>, vector<64x16xf32> -> vector<64x16xf32>
    %12 = vector.shape_cast %11 : vector<64x16xf32> to vector<4x16x16xf32>
    %c0_16 = arith.constant 0 : index
    %c4 = arith.constant 4 : index
    %c0_17 = arith.constant 0 : index
    %c0_18 = arith.constant 0 : index
    %13 = vector.load %arg13[%c0_16, %c4, %c0_17, %c0_18] : memref<1x20x16x16xf32, #tpu.memory_space<vmem>>, vector<1x4x16x16xf32>
    %14 = vector.shape_cast %13 : vector<1x4x16x16xf32> to vector<4x16x16xf32>
    %15 = vector.shape_cast %12 : vector<4x16x16xf32> to vector<1x4x16x16xf32>
    tpu.vector_store %arg13[%c0_16, %c4, %c0_17, %c0_18], %15 {strides = array<i32>} : memref<1x20x16x16xf32, #tpu.memory_space<vmem>>, vector<1x4x16x16xf32>,
    %c0_19 = arith.constant 0 : index
    %c0_20 = arith.constant 0 : index
    %c0_21 = arith.constant 0 : index
    %16 = vector.load %arg6[%c0_19, %c0_20, %c0_21] : memref<1x16x4xf32, #tpu.memory_space<vmem>>, vector<1x16x4xf32>
    %17 = vector.shape_cast %16 : vector<1x16x4xf32> to vector<16x4xf32>
    %c0_22 = arith.constant 0 : index
    %c0_23 = arith.constant 0 : index
    %c0_24 = arith.constant 0 : index
    %18 = vector.load %arg7[%c0_22, %c0_23, %c0_24] : memref<1x64x16xf32, #tpu.memory_space<vmem>>, vector<1x64x16xf32>
    %19 = vector.shape_cast %18 : vector<1x64x16xf32> to vector<64x16xf32>
    %c0_25 = arith.constant 0 : index
    %c0_26 = arith.constant 0 : index
    %20 = vector.load %arg8[%c0_25, %c0_26] : memref<4x16xf32, #tpu.memory_space<vmem>>, vector<4x16xf32>
    %cst_27 = arith.constant dense<0.000000e+00> : vector<64x4xf32>
    %21 = tpu.matmul %19, %17, %cst_27 {dimension_numbers = #tpu.dot_dimension_numbers<[1], [0], [0], [1], [0, 0, 1, 1], [], []>} : vector<64x16xf32>, vector<16x4xf32>, vector<64x4xf32> -> vector<64x4xf32>
    %cst_28 = arith.constant dense<0.000000e+00> : vector<64x16xf32>
    %22 = tpu.matmul %21, %20, %cst_28 {dimension_numbers = #tpu.dot_dimension_numbers<[1], [0], [0], [1], [0, 0, 1, 1], [], []>} : vector<64x4xf32>, vector<4x16xf32>, vector<64x16xf32> -> vector<64x16xf32>
    %23 = vector.shape_cast %22 : vector<64x16xf32> to vector<4x16x16xf32>
    %c0_29 = arith.constant 0 : index
    %c8 = arith.constant 8 : index
    %c0_30 = arith.constant 0 : index
    %c0_31 = arith.constant 0 : index
    %24 = vector.load %arg13[%c0_29, %c8, %c0_30, %c0_31] : memref<1x20x16x16xf32, #tpu.memory_space<vmem>>, vector<1x4x16x16xf32>
    %25 = vector.shape_cast %24 : vector<1x4x16x16xf32> to vector<4x16x16xf32>
    %26 = vector.shape_cast %23 : vector<4x16x16xf32> to vector<1x4x16x16xf32>
    tpu.vector_store %arg13[%c0_29, %c8, %c0_30, %c0_31], %26 {strides = array<i32>} : memref<1x20x16x16xf32, #tpu.memory_space<vmem>>, vector<1x4x16x16xf32>,
    %c0_32 = arith.constant 0 : index
    %c0_33 = arith.constant 0 : index
    %c0_34 = arith.constant 0 : index
    %c0_35 = arith.constant 0 : index
    %27 = vector.load %arg9[%c0_32, %c0_33, %c0_34, %c0_35] : memref<1x4x16x16xf32, #tpu.memory_space<vmem>>, vector<1x4x16x16xf32>
    %28 = vector.shape_cast %27 : vector<1x4x16x16xf32> to vector<4x16x16xf32>
    %c0_36 = arith.constant 0 : index
    %c12 = arith.constant 12 : index
    %c0_37 = arith.constant 0 : index
    %c0_38 = arith.constant 0 : index
    %29 = vector.load %arg13[%c0_36, %c12, %c0_37, %c0_38] : memref<1x20x16x16xf32, #tpu.memory_space<vmem>>, vector<1x4x16x16xf32>
    %30 = vector.shape_cast %29 : vector<1x4x16x16xf32> to vector<4x16x16xf32>
    %31 = vector.shape_cast %28 : vector<4x16x16xf32> to vector<1x4x16x16xf32>
    tpu.vector_store %arg13[%c0_36, %c12, %c0_37, %c0_38], %31 {strides = array<i32>} : memref<1x20x16x16xf32, #tpu.memory_space<vmem>>, vector<1x4x16x16xf32>,
    %c0_39 = arith.constant 0 : index
    %c0_40 = arith.constant 0 : index
    %c0_41 = arith.constant 0 : index
    %32 = vector.load %arg10[%c0_39, %c0_40, %c0_41] : memref<1x24x6xf32, #tpu.memory_space<vmem>>, vector<1x24x6xf32>
    %33 = vector.shape_cast %32 : vector<1x24x6xf32> to vector<24x6xf32>
    %c0_42 = arith.constant 0 : index
    %c0_43 = arith.constant 0 : index
    %c0_44 = arith.constant 0 : index
    %34 = vector.load %arg11[%c0_42, %c0_43, %c0_44] : memref<1x64x24xf32, #tpu.memory_space<vmem>>, vector<1x64x24xf32>
    %35 = vector.shape_cast %34 : vector<1x64x24xf32> to vector<64x24xf32>
    %c0_45 = arith.constant 0 : index
    %c0_46 = arith.constant 0 : index
    %36 = vector.load %arg12[%c0_45, %c0_46] : memref<6x16xf32, #tpu.memory_space<vmem>>, vector<6x16xf32>
    %cst_47 = arith.constant dense<0.000000e+00> : vector<64x6xf32>
    %37 = tpu.matmul %35, %33, %cst_47 {dimension_numbers = #tpu.dot_dimension_numbers<[1], [0], [0], [1], [0, 0, 1, 1], [], []>} : vector<64x24xf32>, vector<24x6xf32>, vector<64x6xf32> -> vector<64x6xf32>
    %cst_48 = arith.constant dense<0.000000e+00> : vector<64x16xf32>
    %38 = tpu.matmul %37, %36, %cst_48 {dimension_numbers = #tpu.dot_dimension_numbers<[1], [0], [0], [1], [0, 0, 1, 1], [], []>} : vector<64x6xf32>, vector<6x16xf32>, vector<64x16xf32> -> vector<64x16xf32>
    %39 = vector.shape_cast %38 : vector<64x16xf32> to vector<4x16x16xf32>
    %c0_49 = arith.constant 0 : index
    %c16 = arith.constant 16 : index
    %c0_50 = arith.constant 0 : index
    %c0_51 = arith.constant 0 : index
    %40 = vector.load %arg13[%c0_49, %c16, %c0_50, %c0_51] : memref<1x20x16x16xf32, #tpu.memory_space<vmem>>, vector<1x4x16x16xf32>
    %41 = vector.shape_cast %40 : vector<1x4x16x16xf32> to vector<4x16x16xf32>
    %42 = vector.shape_cast %39 : vector<4x16x16xf32> to vector<1x4x16x16xf32>
    tpu.vector_store %arg13[%c0_49, %c16, %c0_50, %c0_51], %42 {strides = array<i32>} : memref<1x20x16x16xf32, #tpu.memory_space<vmem>>, vector<1x4x16x16xf32>,
    return
  }
  func.func @transform_0(%arg0: i32, %arg1: i32) -> (i32, i32, i32, i32) {
    %c0_i32 = arith.constant 0 : i32
    %c0_i32_0 = arith.constant 0 : i32
    %c0_i32_1 = arith.constant 0 : i32
    return %arg0, %c0_i32, %arg1, %c0_i32_0 : i32, i32, i32, i32
  }
  func.func @transform_1(%arg0: i32, %arg1: i32) -> (i32, i32, i32) {
    %c0_i32 = arith.constant 0 : i32
    %c0_i32_0 = arith.constant 0 : i32
    %c0_i32_1 = arith.constant 0 : i32
    return %arg0, %c0_i32, %c0_i32_0 : i32, i32, i32
  }
  func.func @transform_2(%arg0: i32, %arg1: i32) -> (i32, i32, i32) {
    %c0_i32 = arith.constant 0 : i32
    %c0_i32_0 = arith.constant 0 : i32
    %c0_i32_1 = arith.constant 0 : i32
    return %arg1, %c0_i32, %c0_i32_0 : i32, i32, i32
  }
  func.func @transform_3(%arg0: i32, %arg1: i32) -> (i32, i32) {
    %c0_i32 = arith.constant 0 : i32
    %c0_i32_0 = arith.constant 0 : i32
    %c0_i32_1 = arith.constant 0 : i32
    return %c0_i32, %c0_i32_0 : i32, i32
  }
  func.func @transform_4(%arg0: i32, %arg1: i32) -> (i32, i32, i32) {
    %c0_i32 = arith.constant 0 : i32
    %c0_i32_0 = arith.constant 0 : i32
    %c0_i32_1 = arith.constant 0 : i32
    return %arg0, %c0_i32, %c0_i32_0 : i32, i32, i32
  }
  func.func @transform_5(%arg0: i32, %arg1: i32) -> (i32, i32, i32) {
    %c0_i32 = arith.constant 0 : i32
    %c0_i32_0 = arith.constant 0 : i32
    %c0_i32_1 = arith.constant 0 : i32
    return %arg1, %c0_i32, %c0_i32_0 : i32, i32, i32
  }
  func.func @transform_6(%arg0: i32, %arg1: i32) -> (i32, i32) {
    %c0_i32 = arith.constant 0 : i32
    %c0_i32_0 = arith.constant 0 : i32
    %c0_i32_1 = arith.constant 0 : i32
    return %c0_i32, %c0_i32_0 : i32, i32
  }
  func.func @transform_7(%arg0: i32, %arg1: i32) -> (i32, i32, i32, i32) {
    %c0_i32 = arith.constant 0 : i32
    %c0_i32_0 = arith.constant 0 : i32
    %c0_i32_1 = arith.constant 0 : i32
    return %arg0, %c0_i32, %arg1, %c0_i32_0 : i32, i32, i32, i32
  }
  func.func @transform_8(%arg0: i32, %arg1: i32) -> (i32, i32, i32) {
    %c0_i32 = arith.constant 0 : i32
    %c0_i32_0 = arith.constant 0 : i32
    %c0_i32_1 = arith.constant 0 : i32
    return %arg0, %c0_i32, %c0_i32_0 : i32, i32, i32
  }
  func.func @transform_9(%arg0: i32, %arg1: i32) -> (i32, i32, i32) {
    %c0_i32 = arith.constant 0 : i32
    %c0_i32_0 = arith.constant 0 : i32
    %c0_i32_1 = arith.constant 0 : i32
    return %arg1, %c0_i32, %c0_i32_0 : i32, i32, i32
  }
  func.func @transform_10(%arg0: i32, %arg1: i32) -> (i32, i32) {
    %c0_i32 = arith.constant 0 : i32
    %c0_i32_0 = arith.constant 0 : i32
    %c0_i32_1 = arith.constant 0 : i32
    return %c0_i32, %c0_i32_0 : i32, i32
  }
  func.func @transform_11(%arg0: i32, %arg1: i32) -> (i32, i32, i32, i32) {
    %c0_i32 = arith.constant 0 : i32
    %c0_i32_0 = arith.constant 0 : i32
    %c0_i32_1 = arith.constant 0 : i32
    return %arg0, %c0_i32, %arg1, %c0_i32_0 : i32, i32, i32, i32
  }
}

</mosaic_0001>

<llo_original>
// kernel: tpu_custom_call.1
$region0: #{tpu_custom_call.1}
  #allocation0 [shape = 'u32[]', space=smem, size = 0x4, offset = 0x4, fixed_abs, tag = 'smem constant byte address 0x4 - core index']
  #allocation1 [shape = 'u32[144,128]{1,0:T(1,128)}', space=vmem, size = 0x12000, scoped, tag = 'internal scratch']
  %s0 = inlined_call_operand.vmem [shape: f32[2,4,16,16], index: 0, kind: input, shape index: {}]
  %s1 = inlined_call_operand.vmem [shape: f32[2,32,8], index: 1, kind: input, shape index: {}]
  %s2 = inlined_call_operand.vmem [shape: f32[1,64,32], index: 2, kind: input, shape index: {}]
  %s3 = inlined_call_operand.vmem [shape: f32[8,16], index: 3, kind: input, shape index: {}]
  %s4 = inlined_call_operand.vmem [shape: f32[2,16,4], index: 4, kind: input, shape index: {}]
  %s5 = inlined_call_operand.vmem [shape: f32[1,64,16], index: 5, kind: input, shape index: {}]
  %s6 = inlined_call_operand.vmem [shape: f32[4,16], index: 6, kind: input, shape index: {}]
  %s7 = inlined_call_operand.vmem [shape: f32[2,4,16,16], index: 7, kind: input, shape index: {}]
  %s8 = inlined_call_operand.vmem [shape: f32[2,24,6], index: 8, kind: input, shape index: {}]
  %s9 = inlined_call_operand.vmem [shape: f32[1,64,24], index: 9, kind: input, shape index: {}]
  %s10 = inlined_call_operand.vmem [shape: f32[6,16], index: 10, kind: input, shape index: {}]
  %s11 = inlined_call_operand.vmem [shape: f32[2,20,16,16], index: 11, kind: output, shape index: {}]
  %s12 = sld [smem:[#allocation0]]
  $region77: #{tpu_custom_call.1} parent=0
    _
  %s14 = ssub.s32 1, %s12
  %s15 = scalar_select 0, %s14, %s12
  loop: start=0, step=1, limit=4
  $region2: #{tpu_custom_call.1} parent=0 // loop_pre_header
    _
  $region3: #{tpu_custom_call.1} parent=0 // loop_header
    %s17 = sphi 0, %s21
    %p18 = scmp.ge.s32.totalorder %s17, 4
    %s24 = sphi 0, %s36
    %s25 = sphi 0, %s32
    %s26 = sphi 0, %s24
    %s27 = sphi 0, %s25
    %s28 = sphi 0, %s26
    %s29 = sphi 0, %s27
    %s41 = sphi 0, %s43
    %s44 = sphi 0, %s41
    %s45 = sphi 0, %s44
    %s61 = sphi 0, %s45
    %s67 = sphi 0, %s69
    %s70 = sphi 0, %s67
    %s71 = sphi 0, %s70
    %s87 = sphi 0, %s71
    %s93 = sphi 0, %s95
    %s96 = sphi 0, %s93
    %s97 = sphi 0, %s96
    %s113 = sphi 0, %s97
    %s117 = sphi 0, %s117
    %s119 = sphi 0, %s117
    %s120 = sphi 0, %s119
    %s134 = sphi 0, %s120
    %s140 = sphi 0, %s142
    %s143 = sphi 0, %s140
    %s144 = sphi 0, %s143
    %s160 = sphi 0, %s144
    %s166 = sphi 0, %s168
    %s169 = sphi 0, %s166
    %s170 = sphi 0, %s169
    %s186 = sphi 0, %s170
    %s190 = sphi 0, %s190
    %s192 = sphi 0, %s190
    %s193 = sphi 0, %s192
    %s207 = sphi 0, %s193
    %s215 = sphi 0, %s217
    %s218 = sphi 0, %s215
    %s219 = sphi 0, %s218
    %s235 = sphi 0, %s219
    %s241 = sphi 0, %s243
    %s244 = sphi 0, %s241
    %s245 = sphi 0, %s244
    %s261 = sphi 0, %s245
    %s267 = sphi 0, %s269
    %s270 = sphi 0, %s267
    %s271 = sphi 0, %s270
    %s287 = sphi 0, %s271
    %s291 = sphi 0, %s291
    %s293 = sphi 0, %s291
    %s294 = sphi 0, %s293
    %s308 = sphi 0, %s294
    %s316 = sphi 0, %s318
    %s319 = sphi 0, %s316
    %s320 = sphi 0, %s319
    %s336 = sphi 0, %s320
  $region4: #{tpu_custom_call.1} parent=0 // loop_header_branch
    %20 = sbr.rel (%p18) target = $region8
  $region5: #{tpu_custom_call.1} parent=0 // loop_body
    %s22 = ssub.s32 %s17, 1
    %s23 = ssub.s32 %s17, 2
    %s30 = sadd.s32 1, %s25
    %p31 = scmp.ge.s32.totalorder %s30, 1
    %s32 = scalar_select %p31, 0, %s30
    %s33 = sadd.s32 1, %s24
    %s34 = scalar_select %p31, %s33, %s24
    %p35 = scmp.ge.s32.totalorder %s34, 2
    %s36 = scalar_select %p35, 0, %s34
    %s37 = ssub.s32 %s24, %s36
    %s38 = ssub.s32 %s25, %s32
    %s39 = sor.u32 %s37, %s38
    %p40 = scmp.eq.s32.totalorder %s39, 0
    %s42 = sadd.s32 %s41, 1
    %s43 = scalar_select %p40, %s41, %s42
    %p46 = pneg %p40
    %p47 = scmp.eq.s32.totalorder %s17, 1
    %p48 = por %p46, %p47
    %p49 = scmp.ne.s32.totalorder %s41, %s44
    %p50 = scmp.eq.s32.totalorder %s17, 0
    %p51 = por %p49, %p50
    %p52 = scmp.ne.s32.totalorder %s41, %s44
    %p53 = scmp.eq.s32.totalorder %s22, 1
    %p54 = por %p52, %p53
    %p55 = scmp.ne.s32.totalorder %s44, %s45
    %p56 = scmp.eq.s32.totalorder %s22, 0
    %p57 = por %p55, %p56
    %p58 = scmp.ne.s32.totalorder %s44, %s45
    %p59 = scmp.eq.s32.totalorder %s23, 1
    %p60 = por %p58, %p59
    %p62 = scmp.ne.s32.totalorder %s45, %s61
    %p63 = scmp.eq.s32.totalorder %s23, 0
    %p64 = por %p62, %p63
    %s65 = ssub.s32 %s24, %s36
    %p66 = scmp.eq.s32.totalorder %s65, 0
    %s68 = sadd.s32 %s67, 1
    %s69 = scalar_select %p66, %s67, %s68
    %p72 = pneg %p66
    %p73 = scmp.eq.s32.totalorder %s17, 1
    %p74 = por %p72, %p73
    %p75 = scmp.ne.s32.totalorder %s67, %s70
    %p76 = scmp.eq.s32.totalorder %s17, 0
    %p77 = por %p75, %p76
    %p78 = scmp.ne.s32.totalorder %s67, %s70
    %p79 = scmp.eq.s32.totalorder %s22, 1
    %p80 = por %p78, %p79
    %p81 = scmp.ne.s32.totalorder %s70, %s71
    %p82 = scmp.eq.s32.totalorder %s22, 0
    %p83 = por %p81, %p82
    %p84 = scmp.ne.s32.totalorder %s70, %s71
    %p85 = scmp.eq.s32.totalorder %s23, 1
    %p86 = por %p84, %p85
    %p88 = scmp.ne.s32.totalorder %s71, %s87
    %p89 = scmp.eq.s32.totalorder %s23, 0
    %p90 = por %p88, %p89
    %s91 = ssub.s32 %s25, %s32
    %p92 = scmp.eq.s32.totalorder %s91, 0
    %s94 = sadd.s32 %s93, 1
    %s95 = scalar_select %p92, %s93, %s94
    %p98 = pneg %p92
    %p99 = scmp.eq.s32.totalorder %s17, 1
    %p100 = por %p98, %p99
    %p101 = scmp.ne.s32.totalorder %s93, %s96
    %p102 = scmp.eq.s32.totalorder %s17, 0
    %p103 = por %p101, %p102
    %p104 = scmp.ne.s32.totalorder %s93, %s96
    %p105 = scmp.eq.s32.totalorder %s22, 1
    %p106 = por %p104, %p105
    %p107 = scmp.ne.s32.totalorder %s96, %s97
    %p108 = scmp.eq.s32.totalorder %s22, 0
    %p109 = por %p107, %p108
    %p110 = scmp.ne.s32.totalorder %s96, %s97
    %p111 = scmp.eq.s32.totalorder %s23, 1
    %p112 = por %p110, %p111
    %p114 = scmp.ne.s32.totalorder %s97, %s113
    %p115 = scmp.eq.s32.totalorder %s23, 0
    %p116 = por %p114, %p115
    %s118 = sadd.s32 %s117, 1
    %p121 = scmp.eq.s32.totalorder %s17, 1
    %p122 = scmp.ne.s32.totalorder %s117, %s119
    %p123 = scmp.eq.s32.totalorder %s17, 0
    %p124 = por %p122, %p123
    %p125 = scmp.ne.s32.totalorder %s117, %s119
    %p126 = scmp.eq.s32.totalorder %s22, 1
    %p127 = por %p125, %p126
    %p128 = scmp.ne.s32.totalorder %s119, %s120
    %p129 = scmp.eq.s32.totalorder %s22, 0
    %p130 = por %p128, %p129
    %p131 = scmp.ne.s32.totalorder %s119, %s120
    %p132 = scmp.eq.s32.totalorder %s23, 1
    %p133 = por %p131, %p132
    %p135 = scmp.ne.s32.totalorder %s120, %s134
    %p136 = scmp.eq.s32.totalorder %s23, 0
    %p137 = por %p135, %p136
    %s138 = ssub.s32 %s24, %s36
    %p139 = scmp.eq.s32.totalorder %s138, 0
    %s141 = sadd.s32 %s140, 1
    %s142 = scalar_select %p139, %s140, %s141
    %p145 = pneg %p139
    %p146 = scmp.eq.s32.totalorder %s17, 1
    %p147 = por %p145, %p146
    %p148 = scmp.ne.s32.totalorder %s140, %s143
    %p149 = scmp.eq.s32.totalorder %s17, 0
    %p150 = por %p148, %p149
    %p151 = scmp.ne.s32.totalorder %s140, %s143
    %p152 = scmp.eq.s32.totalorder %s22, 1
    %p153 = por %p151, %p152
    %p154 = scmp.ne.s32.totalorder %s143, %s144
    %p155 = scmp.eq.s32.totalorder %s22, 0
    %p156 = por %p154, %p155
    %p157 = scmp.ne.s32.totalorder %s143, %s144
    %p158 = scmp.eq.s32.totalorder %s23, 1
    %p159 = por %p157, %p158
    %p161 = scmp.ne.s32.totalorder %s144, %s160
    %p162 = scmp.eq.s32.totalorder %s23, 0
    %p163 = por %p161, %p162
    %s164 = ssub.s32 %s25, %s32
    %p165 = scmp.eq.s32.totalorder %s164, 0
    %s167 = sadd.s32 %s166, 1
    %s168 = scalar_select %p165, %s166, %s167
    %p171 = pneg %p165
    %p172 = scmp.eq.s32.totalorder %s17, 1
    %p173 = por %p171, %p172
    %p174 = scmp.ne.s32.totalorder %s166, %s169
    %p175 = scmp.eq.s32.totalorder %s17, 0
    %p176 = por %p174, %p175
    %p177 = scmp.ne.s32.totalorder %s166, %s169
    %p178 = scmp.eq.s32.totalorder %s22, 1
    %p179 = por %p177, %p178
    %p180 = scmp.ne.s32.totalorder %s169, %s170
    %p181 = scmp.eq.s32.totalorder %s22, 0
    %p182 = por %p180, %p181
    %p183 = scmp.ne.s32.totalorder %s169, %s170
    %p184 = scmp.eq.s32.totalorder %s23, 1
    %p185 = por %p183, %p184
    %p187 = scmp.ne.s32.totalorder %s170, %s186
    %p188 = scmp.eq.s32.totalorder %s23, 0
    %p189 = por %p187, %p188
    %s191 = sadd.s32 %s190, 1
    %p194 = scmp.eq.s32.totalorder %s17, 1
    %p195 = scmp.ne.s32.totalorder %s190, %s192
    %p196 = scmp.eq.s32.totalorder %s17, 0
    %p197 = por %p195, %p196
    %p198 = scmp.ne.s32.totalorder %s190, %s192
    %p199 = scmp.eq.s32.totalorder %s22, 1
    %p200 = por %p198, %p199
    %p201 = scmp.ne.s32.totalorder %s192, %s193
    %p202 = scmp.eq.s32.totalorder %s22, 0
    %p203 = por %p201, %p202
    %p204 = scmp.ne.s32.totalorder %s192, %s193
    %p205 = scmp.eq.s32.totalorder %s23, 1
    %p206 = por %p204, %p205
    %p208 = scmp.ne.s32.totalorder %s193, %s207
    %p209 = scmp.eq.s32.totalorder %s23, 0
    %p210 = por %p208, %p209
    %s211 = ssub.s32 %s24, %s36
    %s212 = ssub.s32 %s25, %s32
    %s213 = sor.u32 %s211, %s212
    %p214 = scmp.eq.s32.totalorder %s213, 0
    %s216 = sadd.s32 %s215, 1
    %s217 = scalar_select %p214, %s215, %s216
    %p220 = pneg %p214
    %p221 = scmp.eq.s32.totalorder %s17, 1
    %p222 = por %p220, %p221
    %p223 = scmp.ne.s32.totalorder %s215, %s218
    %p224 = scmp.eq.s32.totalorder %s17, 0
    %p225 = por %p223, %p224
    %p226 = scmp.ne.s32.totalorder %s215, %s218
    %p227 = scmp.eq.s32.totalorder %s22, 1
    %p228 = por %p226, %p227
    %p229 = scmp.ne.s32.totalorder %s218, %s219
    %p230 = scmp.eq.s32.totalorder %s22, 0
    %p231 = por %p229, %p230
    %p232 = scmp.ne.s32.totalorder %s218, %s219
    %p233 = scmp.eq.s32.totalorder %s23, 1
    %p234 = por %p232, %p233
    %p236 = scmp.ne.s32.totalorder %s219, %s235
    %p237 = scmp.eq.s32.totalorder %s23, 0
    %p238 = por %p236, %p237
    %s239 = ssub.s32 %s24, %s36
    %p240 = scmp.eq.s32.totalorder %s239, 0
    %s242 = sadd.s32 %s241, 1
    %s243 = scalar_select %p240, %s241, %s242
    %p246 = pneg %p240
    %p247 = scmp.eq.s32.totalorder %s17, 1
    %p248 = por %p246, %p247
    %p249 = scmp.ne.s32.totalorder %s241, %s244
    %p250 = scmp.eq.s32.totalorder %s17, 0
    %p251 = por %p249, %p250
    %p252 = scmp.ne.s32.totalorder %s241, %s244
    %p253 = scmp.eq.s32.totalorder %s22, 1
    %p254 = por %p252, %p253
    %p255 = scmp.ne.s32.totalorder %s244, %s245
    %p256 = scmp.eq.s32.totalorder %s22, 0
    %p257 = por %p255, %p256
    %p258 = scmp.ne.s32.totalorder %s244, %s245
    %p259 = scmp.eq.s32.totalorder %s23, 1
    %p260 = por %p258, %p259
    %p262 = scmp.ne.s32.totalorder %s245, %s261
    %p263 = scmp.eq.s32.totalorder %s23, 0
    %p264 = por %p262, %p263
    %s265 = ssub.s32 %s25, %s32
    %p266 = scmp.eq.s32.totalorder %s265, 0
    %s268 = sadd.s32 %s267, 1
    %s269 = scalar_select %p266, %s267, %s268
    %p272 = pneg %p266
    %p273 = scmp.eq.s32.totalorder %s17, 1
    %p274 = por %p272, %p273
    %p275 = scmp.ne.s32.totalorder %s267, %s270
    %p276 = scmp.eq.s32.totalorder %s17, 0
    %p277 = por %p275, %p276
    %p278 = scmp.ne.s32.totalorder %s267, %s270
    %p279 = scmp.eq.s32.totalorder %s22, 1
    %p280 = por %p278, %p279
    %p281 = scmp.ne.s32.totalorder %s270, %s271
    %p282 = scmp.eq.s32.totalorder %s22, 0
    %p283 = por %p281, %p282
    %p284 = scmp.ne.s32.totalorder %s270, %s271
    %p285 = scmp.eq.s32.totalorder %s23, 1
    %p286 = por %p284, %p285
    %p288 = scmp.ne.s32.totalorder %s271, %s287
    %p289 = scmp.eq.s32.totalorder %s23, 0
    %p290 = por %p288, %p289
    %s292 = sadd.s32 %s291, 1
    %p295 = scmp.eq.s32.totalorder %s17, 1
    %p296 = scmp.ne.s32.totalorder %s291, %s293
    %p297 = scmp.eq.s32.totalorder %s17, 0
    %p298 = por %p296, %p297
    %p299 = scmp.ne.s32.totalorder %s291, %s293
    %p300 = scmp.eq.s32.totalorder %s22, 1
    %p301 = por %p299, %p300
    %p302 = scmp.ne.s32.totalorder %s293, %s294
    %p303 = scmp.eq.s32.totalorder %s22, 0
    %p304 = por %p302, %p303
    %p305 = scmp.ne.s32.totalorder %s293, %s294
    %p306 = scmp.eq.s32.totalorder %s23, 1
    %p307 = por %p305, %p306
    %p309 = scmp.ne.s32.totalorder %s294, %s308
    %p310 = scmp.eq.s32.totalorder %s23, 0
    %p311 = por %p309, %p310
    %s312 = ssub.s32 %s24, %s36
    %s313 = ssub.s32 %s25, %s32
    %s314 = sor.u32 %s312, %s313
    %p315 = scmp.eq.s32.totalorder %s314, 0
    %s317 = sadd.s32 %s316, 1
    %s318 = scalar_select %p315, %s316, %s317
    %p321 = pneg %p315
    %p322 = scmp.eq.s32.totalorder %s17, 1
    %p323 = por %p321, %p322
    %p324 = scmp.ne.s32.totalorder %s316, %s319
    %p325 = scmp.eq.s32.totalorder %s17, 0
    %p326 = por %p324, %p325
    %p327 = scmp.ne.s32.totalorder %s316, %s319
    %p328 = scmp.eq.s32.totalorder %s22, 1
    %p329 = por %p327, %p328
    %p330 = scmp.ne.s32.totalorder %s319, %s320
    %p331 = scmp.eq.s32.totalorder %s22, 0
    %p332 = por %p330, %p331
    %p333 = scmp.ne.s32.totalorder %s319, %s320
    %p334 = scmp.eq.s32.totalorder %s23, 1
    %p335 = por %p333, %p334
    %p337 = scmp.ne.s32.totalorder %s320, %s336
    %p338 = scmp.eq.s32.totalorder %s23, 0
    %p339 = por %p337, %p338
    %p340 = scmp.le.s32.totalorder 1, %s17
    %p341 = scmp.lt.s32.totalorder %s17, 3
    %p342 = pnand %p340, %p341
    %p343 = pneg %p342
    // Predicated region
    $region9: #{tpu_custom_call.1} parent=5 // pred_check
      _
    $region10: #{tpu_custom_call.1} parent=5 // pred_check_branch
      %345 = sbr.rel (%p342) target = $region12
    $region11: #{tpu_custom_call.1} parent=5 // pred_region
      %s346 = ssub.s32 %s17, 1
      // Predicated region
      $region13: #{tpu_custom_call.1} parent=11 // pred_check
        %p347 = pneg %p109
      $region14: #{tpu_custom_call.1} parent=11 // pred_check_branch
        %349 = sbr.rel (%p347) target = $region16
      $region15: #{tpu_custom_call.1} parent=11 // pred_region
        %p350 = scmp.lt.s32.totalorder %s27, 0
        %s351 = scalar_select %p350, %s27, 0
        %s352 = smul.addr %s351, 8
        %s353 = smul.addr %s352, 8
        %s354 = scalar_lea.vmem %s2, %s353
      $region16: #{tpu_custom_call.1} parent=11 // pred_fallthru
        _
      // Predicated region
      $region17: #{tpu_custom_call.1} parent=11 // pred_check
        %p355 = pneg %p130
      $region18: #{tpu_custom_call.1} parent=11 // pred_check_branch
        %357 = sbr.rel (%p355) target = $region20
      $region19: #{tpu_custom_call.1} parent=11 // pred_region
        _
      $region20: #{tpu_custom_call.1} parent=11 // pred_fallthru
        _
      // Predicated region
      $region21: #{tpu_custom_call.1} parent=11 // pred_check
        %p358 = pneg %p182
      $region22: #{tpu_custom_call.1} parent=11 // pred_check_branch
        %360 = sbr.rel (%p358) target = $region24
      $region23: #{tpu_custom_call.1} parent=11 // pred_region
        %p361 = scmp.lt.s32.totalorder %s27, 0
        %s362 = scalar_select %p361, %s27, 0
        %s363 = smul.addr %s362, 8
        %s364 = smul.addr %s363, 8
        %s365 = scalar_lea.vmem %s5, %s364
      $region24: #{tpu_custom_call.1} parent=11 // pred_fallthru
        _
      // Predicated region
      $region25: #{tpu_custom_call.1} parent=11 // pred_check
        %p366 = pneg %p203
      $region26: #{tpu_custom_call.1} parent=11 // pred_check_branch
        %368 = sbr.rel (%p366) target = $region28
      $region27: #{tpu_custom_call.1} parent=11 // pred_region
        _
      $region28: #{tpu_custom_call.1} parent=11 // pred_fallthru
        _
      // Predicated region
      $region29: #{tpu_custom_call.1} parent=11 // pred_check
        %p369 = pneg %p283
      $region30: #{tpu_custom_call.1} parent=11 // pred_check_branch
        %371 = sbr.rel (%p369) target = $region32
      $region31: #{tpu_custom_call.1} parent=11 // pred_region
        %p372 = scmp.lt.s32.totalorder %s27, 0
        %s373 = scalar_select %p372, %s27, 0
        %s374 = smul.addr %s373, 8
        %s375 = smul.addr %s374, 8
        %s376 = scalar_lea.vmem %s9, %s375
      $region32: #{tpu_custom_call.1} parent=11 // pred_fallthru
        _
      // Predicated region
      $region33: #{tpu_custom_call.1} parent=11 // pred_check
        %p377 = pneg %p304
      $region34: #{tpu_custom_call.1} parent=11 // pred_check_branch
        %379 = sbr.rel (%p377) target = $region36
      $region35: #{tpu_custom_call.1} parent=11 // pred_region
        _
      $region36: #{tpu_custom_call.1} parent=11 // pred_fallthru
        _
    $region12: #{tpu_custom_call.1} parent=5 // pred_fallthru
      _
    %p380 = scmp.lt.s32.totalorder %s17, 2
    // Predicated region
    $region37: #{tpu_custom_call.1} parent=5 // pred_check
      %p381 = pneg %p380
    $region38: #{tpu_custom_call.1} parent=5 // pred_check_branch
      %383 = sbr.rel (%p381) target = $region40
    $region39: #{tpu_custom_call.1} parent=5 // pred_region
      // Predicated region
      $region41: #{tpu_custom_call.1} parent=39 // pred_check
        %p384 = pneg %p51
      $region42: #{tpu_custom_call.1} parent=39 // pred_check_branch
        %386 = sbr.rel (%p384) target = $region44
      $region43: #{tpu_custom_call.1} parent=39 // pred_region
        %s387 = smul.u32 2, %s25
        %p388 = scmp.lt.s32.totalorder %s24, 1
        %s389 = scalar_select %p388, %s24, 1
        %p390 = scmp.lt.s32.totalorder %s387, 1
        %s391 = scalar_select %p390, %s387, 1
        %s392 = smul.addr %s389, 8
        %s393 = sadd.s32 %s391, %s392
        %s394 = smul.addr %s393, 8
        %s395 = scalar_lea.vmem %s0, %s394
        %s396 = smul.u32 2, %s25
      $region44: #{tpu_custom_call.1} parent=39 // pred_fallthru
        _
      // Predicated region
      $region45: #{tpu_custom_call.1} parent=39 // pred_check
        %p397 = pneg %p77
      $region46: #{tpu_custom_call.1} parent=39 // pred_check_branch
        %399 = sbr.rel (%p397) target = $region48
      $region47: #{tpu_custom_call.1} parent=39 // pred_region
        %p400 = scmp.lt.s32.totalorder %s24, 1
        %s401 = scalar_select %p400, %s24, 1
        %s402 = smul.addr %s401, 4
        %s403 = smul.addr %s402, 8
        %s404 = scalar_lea.vmem %s1, %s403
      $region48: #{tpu_custom_call.1} parent=39 // pred_fallthru
        _
      // Predicated region
      $region49: #{tpu_custom_call.1} parent=39 // pred_check
        %p405 = pneg %p150
      $region50: #{tpu_custom_call.1} parent=39 // pred_check_branch
        %407 = sbr.rel (%p405) target = $region52
      $region51: #{tpu_custom_call.1} parent=39 // pred_region
        %p408 = scmp.lt.s32.totalorder %s24, 1
        %s409 = scalar_select %p408, %s24, 1
        %s410 = smul.addr %s409, 2
        %s411 = smul.addr %s410, 8
        %s412 = scalar_lea.vmem %s4, %s411
      $region52: #{tpu_custom_call.1} parent=39 // pred_fallthru
        _
      // Predicated region
      $region53: #{tpu_custom_call.1} parent=39 // pred_check
        %p413 = pneg %p225
      $region54: #{tpu_custom_call.1} parent=39 // pred_check_branch
        %415 = sbr.rel (%p413) target = $region56
      $region55: #{tpu_custom_call.1} parent=39 // pred_region
        %s416 = smul.u32 2, %s25
        %p417 = scmp.lt.s32.totalorder %s24, 1
        %s418 = scalar_select %p417, %s24, 1
        %p419 = scmp.lt.s32.totalorder %s416, 1
        %s420 = scalar_select %p419, %s416, 1
        %s421 = smul.addr %s418, 8
        %s422 = sadd.s32 %s420, %s421
        %s423 = smul.addr %s422, 8
        %s424 = scalar_lea.vmem %s7, %s423
        %s425 = smul.u32 2, %s25
      $region56: #{tpu_custom_call.1} parent=39 // pred_fallthru
        _
      // Predicated region
      $region57: #{tpu_custom_call.1} parent=39 // pred_check
        %p426 = pneg %p251
      $region58: #{tpu_custom_call.1} parent=39 // pred_check_branch
        %428 = sbr.rel (%p426) target = $region60
      $region59: #{tpu_custom_call.1} parent=39 // pred_region
        %p429 = scmp.lt.s32.totalorder %s24, 1
        %s430 = scalar_select %p429, %s24, 1
        %s431 = smul.addr %s430, 3
        %s432 = smul.addr %s431, 8
        %s433 = scalar_lea.vmem %s8, %s432
      $region60: #{tpu_custom_call.1} parent=39 // pred_fallthru
        _
    $region40: #{tpu_custom_call.1} parent=5 // pred_fallthru
      _
    %p434 = scmp.le.s32.totalorder 1, %s17
    %p435 = scmp.lt.s32.totalorder %s17, 3
    %p436 = pnand %p434, %p435
    %p437 = pneg %p436
    // Predicated region
    $region61: #{tpu_custom_call.1} parent=5 // pred_check
      _
    $region62: #{tpu_custom_call.1} parent=5 // pred_check_branch
      %439 = sbr.rel (%p436) target = $region64
    $region63: #{tpu_custom_call.1} parent=5 // pred_region
      %s440 = ssub.s32 %s17, 1
      %s441 = smul.u32 2, %s27
      %p442 = scmp.lt.s32.totalorder %s26, 1
      %s443 = scalar_select %p442, %s26, 1
      %p444 = scmp.lt.s32.totalorder %s441, 1
      %s445 = scalar_select %p444, %s441, 1
      %s446 = smul.addr %s443, 8
      %s447 = sadd.s32 %s445, %s446
      %s448 = smul.addr %s447, 8
      %s449 = scalar_lea.vmem %s0, %s448
      %p450 = pneg %p57
      %p451 = pneg %p54
      %p452 = scmp.lt.s32.totalorder %s26, 1
      %s453 = scalar_select %p452, %s26, 1
      %s454 = smul.addr %s453, 4
      %s455 = smul.addr %s454, 8
      %s456 = scalar_lea.vmem %s1, %s455
      %p457 = pneg %p83
      %p458 = pneg %p80
      %p459 = scmp.lt.s32.totalorder %s27, 0
      %s460 = scalar_select %p459, %s27, 0
      %s461 = smul.addr %s460, 8
      %s462 = smul.addr %s461, 8
      %s463 = scalar_lea.vmem %s2, %s462
      %p464 = pneg %p109
      %p465 = pneg %p106
      %p466 = pneg %p130
      %p467 = pneg %p127
      %p468 = scmp.lt.s32.totalorder %s26, 1
      %s469 = scalar_select %p468, %s26, 1
      %s470 = smul.addr %s469, 2
      %s471 = smul.addr %s470, 8
      %s472 = scalar_lea.vmem %s4, %s471
      %p473 = pneg %p156
      %p474 = pneg %p153
      %p475 = scmp.lt.s32.totalorder %s27, 0
      %s476 = scalar_select %p475, %s27, 0
      %s477 = smul.addr %s476, 8
      %s478 = smul.addr %s477, 8
      %s479 = scalar_lea.vmem %s5, %s478
      %p480 = pneg %p182
      %p481 = pneg %p179
      %p482 = pneg %p203
      %p483 = pneg %p200
      %s484 = smul.u32 2, %s27
      %p485 = scmp.lt.s32.totalorder %s26, 1
      %s486 = scalar_select %p485, %s26, 1
      %p487 = scmp.lt.s32.totalorder %s484, 1
      %s488 = scalar_select %p487, %s484, 1
      %s489 = smul.addr %s486, 8
      %s490 = sadd.s32 %s488, %s489
      %s491 = smul.addr %s490, 8
      %s492 = scalar_lea.vmem %s7, %s491
      %p493 = pneg %p231
      %p494 = pneg %p228
      %p495 = scmp.lt.s32.totalorder %s26, 1
      %s496 = scalar_select %p495, %s26, 1
      %s497 = smul.addr %s496, 3
      %s498 = smul.addr %s497, 8
      %s499 = scalar_lea.vmem %s8, %s498
      %p500 = pneg %p257
      %p501 = pneg %p254
      %p502 = scmp.lt.s32.totalorder %s27, 0
      %s503 = scalar_select %p502, %s27, 0
      %s504 = smul.addr %s503, 8
      %s505 = smul.addr %s504, 8
      %s506 = scalar_lea.vmem %s9, %s505
      %p507 = pneg %p283
      %p508 = pneg %p280
      %p509 = pneg %p304
      %p510 = pneg %p301
      %p511 = pneg %p332
      %p512 = pneg %p329
      %s513 = smul.u32 2, %s27
      %p514 = scmp.lt.s32.totalorder %s26, 1
      %s515 = scalar_select %p514, %s26, 1
      %p516 = scmp.lt.s32.totalorder %s513, 1
      %s517 = scalar_select %p516, %s513, 1
      %s518 = smul.addr %s515, 40
      %s519 = sadd.s32 %s517, %s518
      %s520 = smul.addr %s519, 8
      %s521 = scalar_lea.vmem %s11, %s520
      %s522 = smul.u32 2, %s27
      %p523 = scmp.lt.s32.totalorder %s26, 1
      %s524 = scalar_select %p523, %s26, 1
      %p525 = scmp.lt.s32.totalorder %s522, 1
      %s526 = scalar_select %p525, %s522, 1
      %s527 = smul.addr %s524, 8
      %s528 = sadd.s32 %s526, %s527
      %s529 = smul.addr %s528, 8
      %s530 = scalar_lea.vmem %s0, %s529
      %s531 = smul.u32 2, %s27
      %p532 = scmp.lt.s32.totalorder %s26, 1
      %s533 = scalar_select %p532, %s26, 1
      %s534 = smul.addr %s533, 4
      %s535 = smul.addr %s534, 8
      %s536 = scalar_lea.vmem %s1, %s535
      %p537 = scmp.lt.s32.totalorder %s27, 0
      %s538 = scalar_select %p537, %s27, 0
      %s539 = smul.addr %s538, 8
      %s540 = smul.addr %s539, 8
      %s541 = scalar_lea.vmem %s2, %s540
      %p542 = scmp.lt.s32.totalorder %s26, 1
      %s543 = scalar_select %p542, %s26, 1
      %s544 = smul.addr %s543, 2
      %s545 = smul.addr %s544, 8
      %s546 = scalar_lea.vmem %s4, %s545
      %p547 = scmp.lt.s32.totalorder %s27, 0
      %s548 = scalar_select %p547, %s27, 0
      %s549 = smul.addr %s548, 8
      %s550 = smul.addr %s549, 8
      %s551 = scalar_lea.vmem %s5, %s550
      %s552 = smul.u32 2, %s27
      %p553 = scmp.lt.s32.totalorder %s26, 1
      %s554 = scalar_select %p553, %s26, 1
      %p555 = scmp.lt.s32.totalorder %s552, 1
      %s556 = scalar_select %p555, %s552, 1
      %s557 = smul.addr %s554, 8
      %s558 = sadd.s32 %s556, %s557
      %s559 = smul.addr %s558, 8
      %s560 = scalar_lea.vmem %s7, %s559
      %s561 = smul.u32 2, %s27
      %p562 = scmp.lt.s32.totalorder %s26, 1
      %s563 = scalar_select %p562, %s26, 1
      %s564 = smul.addr %s563, 3
      %s565 = smul.addr %s564, 8
      %s566 = scalar_lea.vmem %s8, %s565
      %p567 = scmp.lt.s32.totalorder %s27, 0
      %s568 = scalar_select %p567, %s27, 0
      %s569 = smul.addr %s568, 8
      %s570 = smul.addr %s569, 8
      %s571 = scalar_lea.vmem %s9, %s570
      %s572 = smul.u32 2, %s27
      %p573 = scmp.lt.s32.totalorder %s26, 1
      %s574 = scalar_select %p573, %s26, 1
      %p575 = scmp.lt.s32.totalorder %s572, 1
      %s576 = scalar_select %p575, %s572, 1
      %s577 = smul.addr %s574, 40
      %s578 = sadd.s32 %s576, %s577
      %s579 = smul.addr %s578, 8
      %s580 = scalar_lea.vmem %s11, %s579
      %s581 = smul.u32 2, %s27
      %v582 = vld [vmem:[%s530] sm:$0xff]
      %v583 = vld [vmem:[%s530 + $0x8] sm:$0xff]
      %v584 = vld [vmem:[%s530 + $0x10] sm:$0xff]
      %v585 = vld [vmem:[%s530 + $0x18] sm:$0xff]
      %v586 = vld [vmem:[%s530 + $0x20] sm:$0xff]
      %v587 = vld [vmem:[%s530 + $0x28] sm:$0xff]
      %v588 = vld [vmem:[%s530 + $0x30] sm:$0xff]
      %v589 = vld [vmem:[%s530 + $0x38] sm:$0xff]
      %vm590 = vcmask 130048
      %591 = vst.msk [vmem:[%s580] sm:$0xff] %vm590, %v582
      %592 = vst.msk [vmem:[%s580 + $0x8] sm:$0xff] %vm590, %v583
      %593 = vst.msk [vmem:[%s580 + $0x10] sm:$0xff] %vm590, %v584
      %594 = vst.msk [vmem:[%s580 + $0x18] sm:$0xff] %vm590, %v585
      %595 = vst.msk [vmem:[%s580 + $0x20] sm:$0xff] %vm590, %v586
      %596 = vst.msk [vmem:[%s580 + $0x28] sm:$0xff] %vm590, %v587
      %597 = vst.msk [vmem:[%s580 + $0x30] sm:$0xff] %vm590, %v588
      %598 = vst.msk [vmem:[%s580 + $0x38] sm:$0xff] %vm590, %v589
      %v599 = vld [vmem:[%s536] sm:$0xff]
      %v600 = vld [vmem:[%s536 + $0x8] sm:$0xff]
      %v601 = vld [vmem:[%s536 + $0x10] sm:$0xff]
      %v602 = vld [vmem:[%s536 + $0x18] sm:$0xff]
      %v603 = vld [vmem:[%s541] sm:$0xff]
      %v604 = vld [vmem:[%s541 + $0x8] sm:$0xff]
      %v605 = vld [vmem:[%s541 + $0x10] sm:$0xff]
      %v606 = vld [vmem:[%s541 + $0x18] sm:$0xff]
      %v607 = vld [vmem:[%s541 + $0x20] sm:$0xff]
      %v608 = vld [vmem:[%s541 + $0x28] sm:$0xff]
      %v609 = vld [vmem:[%s541 + $0x30] sm:$0xff]
      %v610 = vld [vmem:[%s541 + $0x38] sm:$0xff]
      %v611 = vld [vmem:[%s3] sm:$0xff]
      %vm612 = vcmask 261120
      %v614 = vsel %vm612, %v603, 0
      %v617 = vsel %vm612, %v604, 0
      %v620 = vsel %vm612, %v605, 0
      %v623 = vsel %vm612, %v606, 0
      %v626 = vsel %vm612, %v607, 0
      %v629 = vsel %vm612, %v608, 0
      %v632 = vsel %vm612, %v609, 0
      %v635 = vsel %vm612, %v610, 0
      %637 = vmatprep.subr.mxu0 0.0
      %638 = vmatpush1.msra.mxu0 %v599
      %639 = vmatprep.subr.mxu0 0.0
      %640 = vmatpush1.msra.mxu0 %v600
      %641 = vmatprep.subr.mxu0 0.0
      %642 = vmatpush1.msra.mxu0 %v601
      %643 = vmatprep.subr.mxu0 0.0
      %644 = vmatpush1.msra.mxu0 %v602
      %645 = vmatprep.subr.mxu0 0.0
      %646 = vmatpush1.msra.mxu0 0.0
      %647 = vmatprep.subr.mxu0 0.0
      %648 = vmatpush1.msra.mxu0 0.0
      %649 = vmatprep.subr.mxu0 0.0
      %650 = vmatpush1.msra.mxu0 0.0
      %651 = vmatprep.subr.mxu0 0.0
      %652 = vmatpush1.msra.mxu0 0.0
      %653 = vmatprep.subr.mxu0 0.0
      %654 = vmatpush1.msra.mxu0 0.0
      %655 = vmatprep.subr.mxu0 0.0
      %656 = vmatpush1.msra.mxu0 0.0
      %657 = vmatprep.subr.mxu0 0.0
      %658 = vmatpush1.msra.mxu0 0.0
      %659 = vmatprep.subr.mxu0 0.0
      %660 = vmatpush1.msra.mxu0 0.0
      %661 = vmatprep.subr.mxu0 0.0
      %662 = vmatpush1.msra.mxu0 0.0
      %663 = vmatprep.subr.mxu0 0.0
      %664 = vmatpush1.msra.mxu0 0.0
      %665 = vmatprep.subr.mxu0 0.0
      %666 = vmatpush1.msra.mxu0 0.0
      %667 = vmatprep.subr.mxu0 0.0
      %668 = vmatpush1.msra.mxu0 0.0
      %669 = vmatprep.subr.mxu0 0.0
      %670 = vmatpush1.msra.mxu0 0.0
      %671 = vmatprep.subr.mxu0 0.0
      %672 = vmatpush1.msra.mxu0 0.0
      %673 = vmatprep.subr.mxu0 0.0
      %674 = vmatpush1.msra.mxu0 0.0
      %675 = vmatprep.subr.mxu0 0.0
      %676 = vmatpush1.msra.mxu0 0.0
      %677 = vmatprep.subr.mxu0 0.0
      %678 = vmatpush1.msra.mxu0 0.0
      %679 = vmatprep.subr.mxu0 0.0
      %680 = vmatpush1.msra.mxu0 0.0
      %681 = vmatprep.subr.mxu0 0.0
      %682 = vmatpush1.msra.mxu0 0.0
      %683 = vmatprep.subr.mxu0 0.0
      %684 = vmatpush1.msra.mxu0 0.0
      %685 = vmatprep.subr.mxu0 0.0
      %686 = vmatpush1.msra.mxu0 0.0
      %687 = vmatprep.subr.mxu0 0.0
      %688 = vmatpush1.msra.mxu0 0.0
      %689 = vmatprep.subr.mxu0 0.0
      %690 = vmatpush1.msra.mxu0 0.0
      %691 = vmatprep.subr.mxu0 0.0
      %692 = vmatpush1.msra.mxu0 0.0
      %693 = vmatprep.subr.mxu0 0.0
      %694 = vmatpush1.msra.mxu0 0.0
      %695 = vmatprep.subr.mxu0 0.0
      %696 = vmatpush1.msra.mxu0 0.0
      %697 = vmatprep.subr.mxu0 0.0
      %698 = vmatpush1.msra.mxu0 0.0
      %699 = vmatprep.subr.mxu0 0.0
      %700 = vmatpush1.msra.mxu0 0.0
      %701 = vmatprep.mubr.f32.mxu0 0.0
      %702 = vmatmul.mubr.f32.gmra.mrb[0].mxu0 %v614
      %v703 = vpop.f32.mrb[0].mxu0
      %v704 = vadd.f32 0.0, %v703
      %v705 = vpop.f32.mrb[0].mxu0
      %706 = vmatprep.mubr.f32.mxu0 0.0
      %707 = vmatmul.mubr.f32.gmra.mrb[0].mxu0 %v617
      %v708 = vpop.f32.mrb[0].mxu0
      %v709 = vadd.f32 0.0, %v708
      %v710 = vpop.f32.mrb[0].mxu0
      %711 = vmatprep.mubr.f32.mxu0 0.0
      %712 = vmatmul.mubr.f32.gmra.mrb[0].mxu0 %v620
      %v713 = vpop.f32.mrb[0].mxu0
      %v714 = vadd.f32 0.0, %v713
      %v715 = vpop.f32.mrb[0].mxu0
      %716 = vmatprep.mubr.f32.mxu0 0.0
      %717 = vmatmul.mubr.f32.gmra.mrb[0].mxu0 %v623
      %v718 = vpop.f32.mrb[0].mxu0
      %v719 = vadd.f32 0.0, %v718
      %v720 = vpop.f32.mrb[0].mxu0
      %721 = vmatprep.mubr.f32.mxu0 0.0
      %722 = vmatmul.mubr.f32.gmra.mrb[0].mxu0 %v626
      %v723 = vpop.f32.mrb[0].mxu0
      %v724 = vadd.f32 0.0, %v723
      %v725 = vpop.f32.mrb[0].mxu0
      %726 = vmatprep.mubr.f32.mxu0 0.0
      %727 = vmatmul.mubr.f32.gmra.mrb[0].mxu0 %v629
      %v728 = vpop.f32.mrb[0].mxu0
      %v729 = vadd.f32 0.0, %v728
      %v730 = vpop.f32.mrb[0].mxu0
      %731 = vmatprep.mubr.f32.mxu0 0.0
      %732 = vmatmul.mubr.f32.gmra.mrb[0].mxu0 %v632
      %v733 = vpop.f32.mrb[0].mxu0
      %v734 = vadd.f32 0.0, %v733
      %v735 = vpop.f32.mrb[0].mxu0
      %736 = vmatprep.mubr.f32.mxu0 0.0
      %737 = vmatmul.mubr.f32.gmra.mrb[0].mxu0 %v635
      %v738 = vpop.f32.mrb[0].mxu0
      %v739 = vadd.f32 0.0, %v738
      %v740 = vpop.f32.mrb[0].mxu0
      %741 = vdwg.mxu0
      %vm742 = vcmask 64512
      %v744 = vsel %vm742, %v704, 0
      %v747 = vsel %vm742, %v709, 0
      %v750 = vsel %vm742, %v714, 0
      %v753 = vsel %vm742, %v719, 0
      %v756 = vsel %vm742, %v724, 0
      %v759 = vsel %vm742, %v729, 0
      %v762 = vsel %vm742, %v734, 0
      %v765 = vsel %vm742, %v739, 0
      %767 = vmatprep.subr.mxu0 0.0
      %768 = vmatpush1.msra.mxu0 %v611
      %769 = vmatprep.subr.mxu0 0.0
      %770 = vmatpush1.msra.mxu0 0.0
      %771 = vmatprep.subr.mxu0 0.0
      %772 = vmatpush1.msra.mxu0 0.0
      %773 = vmatprep.subr.mxu0 0.0
      %774 = vmatpush1.msra.mxu0 0.0
      %775 = vmatprep.subr.mxu0 0.0
      %776 = vmatpush1.msra.mxu0 0.0
      %777 = vmatprep.subr.mxu0 0.0
      %778 = vmatpush1.msra.mxu0 0.0
      %779 = vmatprep.subr.mxu0 0.0
      %780 = vmatpush1.msra.mxu0 0.0
      %781 = vmatprep.subr.mxu0 0.0
      %782 = vmatpush1.msra.mxu0 0.0
      %783 = vmatprep.subr.mxu0 0.0
      %784 = vmatpush1.msra.mxu0 0.0
      %785 = vmatprep.subr.mxu0 0.0
      %786 = vmatpush1.msra.mxu0 0.0
      %787 = vmatprep.subr.mxu0 0.0
      %788 = vmatpush1.msra.mxu0 0.0
      %789 = vmatprep.subr.mxu0 0.0
      %790 = vmatpush1.msra.mxu0 0.0
      %791 = vmatprep.subr.mxu0 0.0
      %792 = vmatpush1.msra.mxu0 0.0
      %793 = vmatprep.subr.mxu0 0.0
      %794 = vmatpush1.msra.mxu0 0.0
      %795 = vmatprep.subr.mxu0 0.0
      %796 = vmatpush1.msra.mxu0 0.0
      %797 = vmatprep.subr.mxu0 0.0
      %798 = vmatpush1.msra.mxu0 0.0
      %799 = vmatprep.subr.mxu0 0.0
      %800 = vmatpush1.msra.mxu0 0.0
      %801 = vmatprep.subr.mxu0 0.0
      %802 = vmatpush1.msra.mxu0 0.0
      %803 = vmatprep.subr.mxu0 0.0
      %804 = vmatpush1.msra.mxu0 0.0
      %805 = vmatprep.subr.mxu0 0.0
      %806 = vmatpush1.msra.mxu0 0.0
      %807 = vmatprep.subr.mxu0 0.0
      %808 = vmatpush1.msra.mxu0 0.0
      %809 = vmatprep.subr.mxu0 0.0
      %810 = vmatpush1.msra.mxu0 0.0
      %811 = vmatprep.subr.mxu0 0.0
      %812 = vmatpush1.msra.mxu0 0.0
      %813 = vmatprep.subr.mxu0 0.0
      %814 = vmatpush1.msra.mxu0 0.0
      %815 = vmatprep.subr.mxu0 0.0
      %816 = vmatpush1.msra.mxu0 0.0
      %817 = vmatprep.subr.mxu0 0.0
      %818 = vmatpush1.msra.mxu0 0.0
      %819 = vmatprep.subr.mxu0 0.0
      %820 = vmatpush1.msra.mxu0 0.0
      %821 = vmatprep.subr.mxu0 0.0
      %822 = vmatpush1.msra.mxu0 0.0
      %823 = vmatprep.subr.mxu0 0.0
      %824 = vmatpush1.msra.mxu0 0.0
      %825 = vmatprep.subr.mxu0 0.0
      %826 = vmatpush1.msra.mxu0 0.0
      %827 = vmatprep.subr.mxu0 0.0
      %828 = vmatpush1.msra.mxu0 0.0
      %829 = vmatprep.subr.mxu0 0.0
      %830 = vmatpush1.msra.mxu0 0.0
      %831 = vmatprep.mubr.f32.mxu0 0.0
      %832 = vmatmul.mubr.f32.gmra.mrb[0].mxu0 %v744
      %v833 = vpop.f32.mrb[0].mxu0
      %v834 = vadd.f32 0.0, %v833
      %v835 = vpop.f32.mrb[0].mxu0
      %836 = vmatprep.mubr.f32.mxu0 0.0
      %837 = vmatmul.mubr.f32.gmra.mrb[0].mxu0 %v747
      %v838 = vpop.f32.mrb[0].mxu0
      %v839 = vadd.f32 0.0, %v838
      %v840 = vpop.f32.mrb[0].mxu0
      %841 = vmatprep.mubr.f32.mxu0 0.0
      %842 = vmatmul.mubr.f32.gmra.mrb[0].mxu0 %v750
      %v843 = vpop.f32.mrb[0].mxu0
      %v844 = vadd.f32 0.0, %v843
      %v845 = vpop.f32.mrb[0].mxu0
      %846 = vmatprep.mubr.f32.mxu0 0.0
      %847 = vmatmul.mubr.f32.gmra.mrb[0].mxu0 %v753
      %v848 = vpop.f32.mrb[0].mxu0
      %v849 = vadd.f32 0.0, %v848
      %v850 = vpop.f32.mrb[0].mxu0
      %851 = vmatprep.mubr.f32.mxu0 0.0
      %852 = vmatmul.mubr.f32.gmra.mrb[0].mxu0 %v756
      %v853 = vpop.f32.mrb[0].mxu0
      %v854 = vadd.f32 0.0, %v853
      %v855 = vpop.f32.mrb[0].mxu0
      %856 = vmatprep.mubr.f32.mxu0 0.0
      %857 = vmatmul.mubr.f32.gmra.mrb[0].mxu0 %v759
      %v858 = vpop.f32.mrb[0].mxu0
      %v859 = vadd.f32 0.0, %v858
      %v860 = vpop.f32.mrb[0].mxu0
      %861 = vmatprep.mubr.f32.mxu0 0.0
      %862 = vmatmul.mubr.f32.gmra.mrb[0].mxu0 %v762
      %v863 = vpop.f32.mrb[0].mxu0
      %v864 = vadd.f32 0.0, %v863
      %v865 = vpop.f32.mrb[0].mxu0
      %866 = vmatprep.mubr.f32.mxu0 0.0
      %867 = vmatmul.mubr.f32.gmra.mrb[0].mxu0 %v765
      %v868 = vpop.f32.mrb[0].mxu0
      %v869 = vadd.f32 0.0, %v868
      %v870 = vpop.f32.mrb[0].mxu0
      %871 = vdwg.mxu0
      %s872 = scalar_lea.vmem %s580, 64
      %873 = vst.msk [vmem:[%s872] sm:$0xff] %vm590, %v834
      %874 = vst.msk [vmem:[%s872 + $0x8] sm:$0xff] %vm590, %v839
      %875 = vst.msk [vmem:[%s872 + $0x10] sm:$0xff] %vm590, %v844
      %876 = vst.msk [vmem:[%s872 + $0x18] sm:$0xff] %vm590, %v849
      %877 = vst.msk [vmem:[%s872 + $0x20] sm:$0xff] %vm590, %v854
      %878 = vst.msk [vmem:[%s872 + $0x28] sm:$0xff] %vm590, %v859
      %879 = vst.msk [vmem:[%s872 + $0x30] sm:$0xff] %vm590, %v864
      %880 = vst.msk [vmem:[%s872 + $0x38] sm:$0xff] %vm590, %v869
      %v881 = vld [vmem:[%s546] sm:$0xff]
      %v882 = vld [vmem:[%s546 + $0x8] sm:$0xff]
      %v883 = vld [vmem:[%s551] sm:$0xff]
      %v884 = vld [vmem:[%s551 + $0x8] sm:$0xff]
      %v885 = vld [vmem:[%s551 + $0x10] sm:$0xff]
      %v886 = vld [vmem:[%s551 + $0x18] sm:$0xff]
      %v887 = vld [vmem:[%s551 + $0x20] sm:$0xff]
      %v888 = vld [vmem:[%s551 + $0x28] sm:$0xff]
      %v889 = vld [vmem:[%s551 + $0x30] sm:$0xff]
      %v890 = vld [vmem:[%s551 + $0x38] sm:$0xff]
      %v891 = vld [vmem:[%s6] sm:$0xf]
      %v893 = vsel %vm590, %v883, 0
      %v896 = vsel %vm590, %v884, 0
      %v899 = vsel %vm590, %v885, 0
      %v902 = vsel %vm590, %v886, 0
      %v905 = vsel %vm590, %v887, 0
      %v908 = vsel %vm590, %v888, 0
      %v911 = vsel %vm590, %v889, 0
      %v914 = vsel %vm590, %v890, 0
      %916 = vmatprep.subr.mxu0 0.0
      %917 = vmatpush1.msra.mxu0 %v881
      %918 = vmatprep.subr.mxu0 0.0
      %919 = vmatpush1.msra.mxu0 %v882
      %920 = vmatprep.subr.mxu0 0.0
      %921 = vmatpush1.msra.mxu0 0.0
      %922 = vmatprep.subr.mxu0 0.0
      %923 = vmatpush1.msra.mxu0 0.0
      %924 = vmatprep.subr.mxu0 0.0
      %925 = vmatpush1.msra.mxu0 0.0
      %926 = vmatprep.subr.mxu0 0.0
      %927 = vmatpush1.msra.mxu0 0.0
      %928 = vmatprep.subr.mxu0 0.0
      %929 = vmatpush1.msra.mxu0 0.0
      %930 = vmatprep.subr.mxu0 0.0
      %931 = vmatpush1.msra.mxu0 0.0
      %932 = vmatprep.subr.mxu0 0.0
      %933 = vmatpush1.msra.mxu0 0.0
      %934 = vmatprep.subr.mxu0 0.0
      %935 = vmatpush1.msra.mxu0 0.0
      %936 = vmatprep.subr.mxu0 0.0
      %937 = vmatpush1.msra.mxu0 0.0
      %938 = vmatprep.subr.mxu0 0.0
      %939 = vmatpush1.msra.mxu0 0.0
      %940 = vmatprep.subr.mxu0 0.0
      %941 = vmatpush1.msra.mxu0 0.0
      %942 = vmatprep.subr.mxu0 0.0
      %943 = vmatpush1.msra.mxu0 0.0
      %944 = vmatprep.subr.mxu0 0.0
      %945 = vmatpush1.msra.mxu0 0.0
      %946 = vmatprep.subr.mxu0 0.0
      %947 = vmatpush1.msra.mxu0 0.0
      %948 = vmatprep.subr.mxu0 0.0
      %949 = vmatpush1.msra.mxu0 0.0
      %950 = vmatprep.subr.mxu0 0.0
      %951 = vmatpush1.msra.mxu0 0.0
      %952 = vmatprep.subr.mxu0 0.0
      %953 = vmatpush1.msra.mxu0 0.0
      %954 = vmatprep.subr.mxu0 0.0
      %955 = vmatpush1.msra.mxu0 0.0
      %956 = vmatprep.subr.mxu0 0.0
      %957 = vmatpush1.msra.mxu0 0.0
      %958 = vmatprep.subr.mxu0 0.0
      %959 = vmatpush1.msra.mxu0 0.0
      %960 = vmatprep.subr.mxu0 0.0
      %961 = vmatpush1.msra.mxu0 0.0
      %962 = vmatprep.subr.mxu0 0.0
      %963 = vmatpush1.msra.mxu0 0.0
      %964 = vmatprep.subr.mxu0 0.0
      %965 = vmatpush1.msra.mxu0 0.0
      %966 = vmatprep.subr.mxu0 0.0
      %967 = vmatpush1.msra.mxu0 0.0
      %968 = vmatprep.subr.mxu0 0.0
      %969 = vmatpush1.msra.mxu0 0.0
      %970 = vmatprep.subr.mxu0 0.0
      %971 = vmatpush1.msra.mxu0 0.0
      %972 = vmatprep.subr.mxu0 0.0
      %973 = vmatpush1.msra.mxu0 0.0
      %974 = vmatprep.subr.mxu0 0.0
      %975 = vmatpush1.msra.mxu0 0.0
      %976 = vmatprep.subr.mxu0 0.0
      %977 = vmatpush1.msra.mxu0 0.0
      %978 = vmatprep.subr.mxu0 0.0
      %979 = vmatpush1.msra.mxu0 0.0
      %980 = vmatprep.mubr.f32.mxu0 0.0
      %981 = vmatmul.mubr.f32.gmra.mrb[0].mxu0 %v893
      %v982 = vpop.f32.mrb[0].mxu0
      %v983 = vadd.f32 0.0, %v982
      %v984 = vpop.f32.mrb[0].mxu0
      %985 = vmatprep.mubr.f32.mxu0 0.0
      %986 = vmatmul.mubr.f32.gmra.mrb[0].mxu0 %v896
      %v987 = vpop.f32.mrb[0].mxu0
      %v988 = vadd.f32 0.0, %v987
      %v989 = vpop.f32.mrb[0].mxu0
      %990 = vmatprep.mubr.f32.mxu0 0.0
      %991 = vmatmul.mubr.f32.gmra.mrb[0].mxu0 %v899
      %v992 = vpop.f32.mrb[0].mxu0
      %v993 = vadd.f32 0.0, %v992
      %v994 = vpop.f32.mrb[0].mxu0
      %995 = vmatprep.mubr.f32.mxu0 0.0
      %996 = vmatmul.mubr.f32.gmra.mrb[0].mxu0 %v902
      %v997 = vpop.f32.mrb[0].mxu0
      %v998 = vadd.f32 0.0, %v997
      %v999 = vpop.f32.mrb[0].mxu0
      %1000 = vmatprep.mubr.f32.mxu0 0.0
      %1001 = vmatmul.mubr.f32.gmra.mrb[0].mxu0 %v905
      %v1002 = vpop.f32.mrb[0].mxu0
      %v1003 = vadd.f32 0.0, %v1002
      %v1004 = vpop.f32.mrb[0].mxu0
      %1005 = vmatprep.mubr.f32.mxu0 0.0
      %1006 = vmatmul.mubr.f32.gmra.mrb[0].mxu0 %v908
      %v1007 = vpop.f32.mrb[0].mxu0
      %v1008 = vadd.f32 0.0, %v1007
      %v1009 = vpop.f32.mrb[0].mxu0
      %1010 = vmatprep.mubr.f32.mxu0 0.0
      %1011 = vmatmul.mubr.f32.gmra.mrb[0].mxu0 %v911
      %v1012 = vpop.f32.mrb[0].mxu0
      %v1013 = vadd.f32 0.0, %v1012
      %v1014 = vpop.f32.mrb[0].mxu0
      %1015 = vmatprep.mubr.f32.mxu0 0.0
      %1016 = vmatmul.mubr.f32.gmra.mrb[0].mxu0 %v914
      %v1017 = vpop.f32.mrb[0].mxu0
      %v1018 = vadd.f32 0.0, %v1017
      %v1019 = vpop.f32.mrb[0].mxu0
      %1020 = vdwg.mxu0
      %vm1021 = vcmask 31744
      %v1023 = vsel %vm1021, %v983, 0
      %v1026 = vsel %vm1021, %v988, 0
      %v1029 = vsel %vm1021, %v993, 0
      %v1032 = vsel %vm1021, %v998, 0
      %v1035 = vsel %vm1021, %v1003, 0
      %v1038 = vsel %vm1021, %v1008, 0
      %v1041 = vsel %vm1021, %v1013, 0
      %v1044 = vsel %vm1021, %v1018, 0
      %vm1046 = vcmask 1043456
      %v1048 = vsel %vm1046, %v891, 0
      %1050 = vmatprep.subr.mxu0 0.0
      %1051 = vmatpush1.msra.mxu0 %v1048
      %1052 = vmatprep.subr.mxu0 0.0
      %1053 = vmatpush1.msra.mxu0 0.0
      %1054 = vmatprep.subr.mxu0 0.0
      %1055 = vmatpush1.msra.mxu0 0.0
      %1056 = vmatprep.subr.mxu0 0.0
      %1057 = vmatpush1.msra.mxu0 0.0
      %1058 = vmatprep.subr.mxu0 0.0
      %1059 = vmatpush1.msra.mxu0 0.0
      %1060 = vmatprep.subr.mxu0 0.0
      %1061 = vmatpush1.msra.mxu0 0.0
      %1062 = vmatprep.subr.mxu0 0.0
      %1063 = vmatpush1.msra.mxu0 0.0
      %1064 = vmatprep.subr.mxu0 0.0
      %1065 = vmatpush1.msra.mxu0 0.0
      %1066 = vmatprep.subr.mxu0 0.0
      %1067 = vmatpush1.msra.mxu0 0.0
      %1068 = vmatprep.subr.mxu0 0.0
      %1069 = vmatpush1.msra.mxu0 0.0
      %1070 = vmatprep.subr.mxu0 0.0
      %1071 = vmatpush1.msra.mxu0 0.0
      %1072 = vmatprep.subr.mxu0 0.0
      %1073 = vmatpush1.msra.mxu0 0.0
      %1074 = vmatprep.subr.mxu0 0.0
      %1075 = vmatpush1.msra.mxu0 0.0
      %1076 = vmatprep.subr.mxu0 0.0
      %1077 = vmatpush1.msra.mxu0 0.0
      %1078 = vmatprep.subr.mxu0 0.0
      %1079 = vmatpush1.msra.mxu0 0.0
      %1080 = vmatprep.subr.mxu0 0.0
      %1081 = vmatpush1.msra.mxu0 0.0
      %1082 = vmatprep.subr.mxu0 0.0
      %1083 = vmatpush1.msra.mxu0 0.0
      %1084 = vmatprep.subr.mxu0 0.0
      %1085 = vmatpush1.msra.mxu0 0.0
      %1086 = vmatprep.subr.mxu0 0.0
      %1087 = vmatpush1.msra.mxu0 0.0
      %1088 = vmatprep.subr.mxu0 0.0
      %1089 = vmatpush1.msra.mxu0 0.0
      %1090 = vmatprep.subr.mxu0 0.0
      %1091 = vmatpush1.msra.mxu0 0.0
      %1092 = vmatprep.subr.mxu0 0.0
      %1093 = vmatpush1.msra.mxu0 0.0
      %1094 = vmatprep.subr.mxu0 0.0
      %1095 = vmatpush1.msra.mxu0 0.0
      %1096 = vmatprep.subr.mxu0 0.0
      %1097 = vmatpush1.msra.mxu0 0.0
      %1098 = vmatprep.subr.mxu0 0.0
      %1099 = vmatpush1.msra.mxu0 0.0
      %1100 = vmatprep.subr.mxu0 0.0
      %1101 = vmatpush1.msra.mxu0 0.0
      %1102 = vmatprep.subr.mxu0 0.0
      %1103 = vmatpush1.msra.mxu0 0.0
      %1104 = vmatprep.subr.mxu0 0.0
      %1105 = vmatpush1.msra.mxu0 0.0
      %1106 = vmatprep.subr.mxu0 0.0
      %1107 = vmatpush1.msra.mxu0 0.0
      %1108 = vmatprep.subr.mxu0 0.0
      %1109 = vmatpush1.msra.mxu0 0.0
      %1110 = vmatprep.subr.mxu0 0.0
      %1111 = vmatpush1.msra.mxu0 0.0
      %1112 = vmatprep.subr.mxu0 0.0
      %1113 = vmatpush1.msra.mxu0 0.0
      %1114 = vmatprep.mubr.f32.mxu0 0.0
      %1115 = vmatmul.mubr.f32.gmra.mrb[0].mxu0 %v1023
      %v1116 = vpop.f32.mrb[0].mxu0
      %v1117 = vadd.f32 0.0, %v1116
      %v1118 = vpop.f32.mrb[0].mxu0
      %1119 = vmatprep.mubr.f32.mxu0 0.0
      %1120 = vmatmul.mubr.f32.gmra.mrb[0].mxu0 %v1026
      %v1121 = vpop.f32.mrb[0].mxu0
      %v1122 = vadd.f32 0.0, %v1121
      %v1123 = vpop.f32.mrb[0].mxu0
      %1124 = vmatprep.mubr.f32.mxu0 0.0
      %1125 = vmatmul.mubr.f32.gmra.mrb[0].mxu0 %v1029
      %v1126 = vpop.f32.mrb[0].mxu0
      %v1127 = vadd.f32 0.0, %v1126
      %v1128 = vpop.f32.mrb[0].mxu0
      %1129 = vmatprep.mubr.f32.mxu0 0.0
      %1130 = vmatmul.mubr.f32.gmra.mrb[0].mxu0 %v1032
      %v1131 = vpop.f32.mrb[0].mxu0
      %v1132 = vadd.f32 0.0, %v1131
      %v1133 = vpop.f32.mrb[0].mxu0
      %1134 = vmatprep.mubr.f32.mxu0 0.0
      %1135 = vmatmul.mubr.f32.gmra.mrb[0].mxu0 %v1035
      %v1136 = vpop.f32.mrb[0].mxu0
      %v1137 = vadd.f32 0.0, %v1136
      %v1138 = vpop.f32.mrb[0].mxu0
      %1139 = vmatprep.mubr.f32.mxu0 0.0
      %1140 = vmatmul.mubr.f32.gmra.mrb[0].mxu0 %v1038
      %v1141 = vpop.f32.mrb[0].mxu0
      %v1142 = vadd.f32 0.0, %v1141
      %v1143 = vpop.f32.mrb[0].mxu0
      %1144 = vmatprep.mubr.f32.mxu0 0.0
      %1145 = vmatmul.mubr.f32.gmra.mrb[0].mxu0 %v1041
      %v1146 = vpop.f32.mrb[0].mxu0
      %v1147 = vadd.f32 0.0, %v1146
      %v1148 = vpop.f32.mrb[0].mxu0
      %1149 = vmatprep.mubr.f32.mxu0 0.0
      %1150 = vmatmul.mubr.f32.gmra.mrb[0].mxu0 %v1044
      %v1151 = vpop.f32.mrb[0].mxu0
      %v1152 = vadd.f32 0.0, %v1151
      %v1153 = vpop.f32.mrb[0].mxu0
      %1154 = vdwg.mxu0
      %s1155 = scalar_lea.vmem %s580, 128
      %1156 = vst.msk [vmem:[%s1155] sm:$0xff] %vm590, %v1117
      %1157 = vst.msk [vmem:[%s1155 + $0x8] sm:$0xff] %vm590, %v1122
      %1158 = vst.msk [vmem:[%s1155 + $0x10] sm:$0xff] %vm590, %v1127
      %1159 = vst.msk [vmem:[%s1155 + $0x18] sm:$0xff] %vm590, %v1132
      %1160 = vst.msk [vmem:[%s1155 + $0x20] sm:$0xff] %vm590, %v1137
      %1161 = vst.msk [vmem:[%s1155 + $0x28] sm:$0xff] %vm590, %v1142
      %1162 = vst.msk [vmem:[%s1155 + $0x30] sm:$0xff] %vm590, %v1147
      %1163 = vst.msk [vmem:[%s1155 + $0x38] sm:$0xff] %vm590, %v1152
      %v1164 = vld [vmem:[%s560] sm:$0xff]
      %v1165 = vld [vmem:[%s560 + $0x8] sm:$0xff]
      %v1166 = vld [vmem:[%s560 + $0x10] sm:$0xff]
      %v1167 = vld [vmem:[%s560 + $0x18] sm:$0xff]
      %v1168 = vld [vmem:[%s560 + $0x20] sm:$0xff]
      %v1169 = vld [vmem:[%s560 + $0x28] sm:$0xff]
      %v1170 = vld [vmem:[%s560 + $0x30] sm:$0xff]
      %v1171 = vld [vmem:[%s560 + $0x38] sm:$0xff]
      %s1172 = scalar_lea.vmem %s580, 192
      %1173 = vst.msk [vmem:[%s1172] sm:$0xff] %vm590, %v1164
      %1174 = vst.msk [vmem:[%s1172 + $0x8] sm:$0xff] %vm590, %v1165
      %1175 = vst.msk [vmem:[%s1172 + $0x10] sm:$0xff] %vm590, %v1166
      %1176 = vst.msk [vmem:[%s1172 + $0x18] sm:$0xff] %vm590, %v1167
      %1177 = vst.msk [vmem:[%s1172 + $0x20] sm:$0xff] %vm590, %v1168
      %1178 = vst.msk [vmem:[%s1172 + $0x28] sm:$0xff] %vm590, %v1169
      %1179 = vst.msk [vmem:[%s1172 + $0x30] sm:$0xff] %vm590, %v1170
      %1180 = vst.msk [vmem:[%s1172 + $0x38] sm:$0xff] %vm590, %v1171
      %v1181 = vld [vmem:[%s566] sm:$0xff]
      %v1182 = vld [vmem:[%s566 + $0x8] sm:$0xff]
      %v1183 = vld [vmem:[%s566 + $0x10] sm:$0xff]
      %v1184 = vld [vmem:[%s571] sm:$0xff]
      %v1185 = vld [vmem:[%s571 + $0x8] sm:$0xff]
      %v1186 = vld [vmem:[%s571 + $0x10] sm:$0xff]
      %v1187 = vld [vmem:[%s571 + $0x18] sm:$0xff]
      %v1188 = vld [vmem:[%s571 + $0x20] sm:$0xff]
      %v1189 = vld [vmem:[%s571 + $0x28] sm:$0xff]
      %v1190 = vld [vmem:[%s571 + $0x30] sm:$0xff]
      %v1191 = vld [vmem:[%s571 + $0x38] sm:$0xff]
      %v1192 = vld [vmem:[%s10] sm:$0x3f]
      %vm1193 = vcmask 195584
      %v1195 = vsel %vm1193, %v1184, 0
      %v1198 = vsel %vm1193, %v1185, 0
      %v1201 = vsel %vm1193, %v1186, 0
      %v1204 = vsel %vm1193, %v1187, 0
      %v1207 = vsel %vm1193, %v1188, 0
      %v1210 = vsel %vm1193, %v1189, 0
      %v1213 = vsel %vm1193, %v1190, 0
      %v1216 = vsel %vm1193, %v1191, 0
      %1218 = vmatprep.subr.mxu0 0.0
      %1219 = vmatpush1.msra.mxu0 %v1181
      %1220 = vmatprep.subr.mxu0 0.0
      %1221 = vmatpush1.msra.mxu0 %v1182
      %1222 = vmatprep.subr.mxu0 0.0
      %1223 = vmatpush1.msra.mxu0 %v1183
      %1224 = vmatprep.subr.mxu0 0.0
      %1225 = vmatpush1.msra.mxu0 0.0
      %1226 = vmatprep.subr.mxu0 0.0
      %1227 = vmatpush1.msra.mxu0 0.0
      %1228 = vmatprep.subr.mxu0 0.0
      %1229 = vmatpush1.msra.mxu0 0.0
      %1230 = vmatprep.subr.mxu0 0.0
      %1231 = vmatpush1.msra.mxu0 0.0
      %1232 = vmatprep.subr.mxu0 0.0
      %1233 = vmatpush1.msra.mxu0 0.0
      %1234 = vmatprep.subr.mxu0 0.0
      %1235 = vmatpush1.msra.mxu0 0.0
      %1236 = vmatprep.subr.mxu0 0.0
      %1237 = vmatpush1.msra.mxu0 0.0
      %1238 = vmatprep.subr.mxu0 0.0
      %1239 = vmatpush1.msra.mxu0 0.0
      %1240 = vmatprep.subr.mxu0 0.0
      %1241 = vmatpush1.msra.mxu0 0.0
      %1242 = vmatprep.subr.mxu0 0.0
      %1243 = vmatpush1.msra.mxu0 0.0
      %1244 = vmatprep.subr.mxu0 0.0
      %1245 = vmatpush1.msra.mxu0 0.0
      %1246 = vmatprep.subr.mxu0 0.0
      %1247 = vmatpush1.msra.mxu0 0.0
      %1248 = vmatprep.subr.mxu0 0.0
      %1249 = vmatpush1.msra.mxu0 0.0
      %1250 = vmatprep.subr.mxu0 0.0
      %1251 = vmatpush1.msra.mxu0 0.0
      %1252 = vmatprep.subr.mxu0 0.0
      %1253 = vmatpush1.msra.mxu0 0.0
      %1254 = vmatprep.subr.mxu0 0.0
      %1255 = vmatpush1.msra.mxu0 0.0
      %1256 = vmatprep.subr.mxu0 0.0
      %1257 = vmatpush1.msra.mxu0 0.0
      %1258 = vmatprep.subr.mxu0 0.0
      %1259 = vmatpush1.msra.mxu0 0.0
      %1260 = vmatprep.subr.mxu0 0.0
      %1261 = vmatpush1.msra.mxu0 0.0
      %1262 = vmatprep.subr.mxu0 0.0
      %1263 = vmatpush1.msra.mxu0 0.0
      %1264 = vmatprep.subr.mxu0 0.0
      %1265 = vmatpush1.msra.mxu0 0.0
      %1266 = vmatprep.subr.mxu0 0.0
      %1267 = vmatpush1.msra.mxu0 0.0
      %1268 = vmatprep.subr.mxu0 0.0
      %1269 = vmatpush1.msra.mxu0 0.0
      %1270 = vmatprep.subr.mxu0 0.0
      %1271 = vmatpush1.msra.mxu0 0.0
      %1272 = vmatprep.subr.mxu0 0.0
      %1273 = vmatpush1.msra.mxu0 0.0
      %1274 = vmatprep.subr.mxu0 0.0
      %1275 = vmatpush1.msra.mxu0 0.0
      %1276 = vmatprep.subr.mxu0 0.0
      %1277 = vmatpush1.msra.mxu0 0.0
      %1278 = vmatprep.subr.mxu0 0.0
      %1279 = vmatpush1.msra.mxu0 0.0
      %1280 = vmatprep.subr.mxu0 0.0
      %1281 = vmatpush1.msra.mxu0 0.0
      %1282 = vmatprep.mubr.f32.mxu0 0.0
      %1283 = vmatmul.mubr.f32.gmra.mrb[0].mxu0 %v1195
      %v1284 = vpop.f32.mrb[0].mxu0
      %v1285 = vadd.f32 0.0, %v1284
      %v1286 = vpop.f32.mrb[0].mxu0
      %1287 = vmatprep.mubr.f32.mxu0 0.0
      %1288 = vmatmul.mubr.f32.gmra.mrb[0].mxu0 %v1198
      %v1289 = vpop.f32.mrb[0].mxu0
      %v1290 = vadd.f32 0.0, %v1289
      %v1291 = vpop.f32.mrb[0].mxu0
      %1292 = vmatprep.mubr.f32.mxu0 0.0
      %1293 = vmatmul.mubr.f32.gmra.mrb[0].mxu0 %v1201
      %v1294 = vpop.f32.mrb[0].mxu0
      %v1295 = vadd.f32 0.0, %v1294
      %v1296 = vpop.f32.mrb[0].mxu0
      %1297 = vmatprep.mubr.f32.mxu0 0.0
      %1298 = vmatmul.mubr.f32.gmra.mrb[0].mxu0 %v1204
      %v1299 = vpop.f32.mrb[0].mxu0
      %v1300 = vadd.f32 0.0, %v1299
      %v1301 = vpop.f32.mrb[0].mxu0
      %1302 = vmatprep.mubr.f32.mxu0 0.0
      %1303 = vmatmul.mubr.f32.gmra.mrb[0].mxu0 %v1207
      %v1304 = vpop.f32.mrb[0].mxu0
      %v1305 = vadd.f32 0.0, %v1304
      %v1306 = vpop.f32.mrb[0].mxu0
      %1307 = vmatprep.mubr.f32.mxu0 0.0
      %1308 = vmatmul.mubr.f32.gmra.mrb[0].mxu0 %v1210
      %v1309 = vpop.f32.mrb[0].mxu0
      %v1310 = vadd.f32 0.0, %v1309
      %v1311 = vpop.f32.mrb[0].mxu0
      %1312 = vmatprep.mubr.f32.mxu0 0.0
      %1313 = vmatmul.mubr.f32.gmra.mrb[0].mxu0 %v1213
      %v1314 = vpop.f32.mrb[0].mxu0
      %v1315 = vadd.f32 0.0, %v1314
      %v1316 = vpop.f32.mrb[0].mxu0
      %1317 = vmatprep.mubr.f32.mxu0 0.0
      %1318 = vmatmul.mubr.f32.gmra.mrb[0].mxu0 %v1216
      %v1319 = vpop.f32.mrb[0].mxu0
      %v1320 = vadd.f32 0.0, %v1319
      %v1321 = vpop.f32.mrb[0].mxu0
      %1322 = vdwg.mxu0
      %vm1323 = vcmask 48128
      %v1325 = vsel %vm1323, %v1285, 0
      %v1328 = vsel %vm1323, %v1290, 0
      %v1331 = vsel %vm1323, %v1295, 0
      %v1334 = vsel %vm1323, %v1300, 0
      %v1337 = vsel %vm1323, %v1305, 0
      %v1340 = vsel %vm1323, %v1310, 0
      %v1343 = vsel %vm1323, %v1315, 0
      %v1346 = vsel %vm1323, %v1320, 0
      %vm1348 = vcmask 1045504
      %v1350 = vsel %vm1348, %v1192, 0
      %1352 = vmatprep.subr.mxu0 0.0
      %1353 = vmatpush1.msra.mxu0 %v1350
      %1354 = vmatprep.subr.mxu0 0.0
      %1355 = vmatpush1.msra.mxu0 0.0
      %1356 = vmatprep.subr.mxu0 0.0
      %1357 = vmatpush1.msra.mxu0 0.0
      %1358 = vmatprep.subr.mxu0 0.0
      %1359 = vmatpush1.msra.mxu0 0.0
      %1360 = vmatprep.subr.mxu0 0.0
      %1361 = vmatpush1.msra.mxu0 0.0
      %1362 = vmatprep.subr.mxu0 0.0
      %1363 = vmatpush1.msra.mxu0 0.0
      %1364 = vmatprep.subr.mxu0 0.0
      %1365 = vmatpush1.msra.mxu0 0.0
      %1366 = vmatprep.subr.mxu0 0.0
      %1367 = vmatpush1.msra.mxu0 0.0
      %1368 = vmatprep.subr.mxu0 0.0
      %1369 = vmatpush1.msra.mxu0 0.0
      %1370 = vmatprep.subr.mxu0 0.0
      %1371 = vmatpush1.msra.mxu0 0.0
      %1372 = vmatprep.subr.mxu0 0.0
      %1373 = vmatpush1.msra.mxu0 0.0
      %1374 = vmatprep.subr.mxu0 0.0
      %1375 = vmatpush1.msra.mxu0 0.0
      %1376 = vmatprep.subr.mxu0 0.0
      %1377 = vmatpush1.msra.mxu0 0.0
      %1378 = vmatprep.subr.mxu0 0.0
      %1379 = vmatpush1.msra.mxu0 0.0
      %1380 = vmatprep.subr.mxu0 0.0
      %1381 = vmatpush1.msra.mxu0 0.0
      %1382 = vmatprep.subr.mxu0 0.0
      %1383 = vmatpush1.msra.mxu0 0.0
      %1384 = vmatprep.subr.mxu0 0.0
      %1385 = vmatpush1.msra.mxu0 0.0
      %1386 = vmatprep.subr.mxu0 0.0
      %1387 = vmatpush1.msra.mxu0 0.0
      %1388 = vmatprep.subr.mxu0 0.0
      %1389 = vmatpush1.msra.mxu0 0.0
      %1390 = vmatprep.subr.mxu0 0.0
      %1391 = vmatpush1.msra.mxu0 0.0
      %1392 = vmatprep.subr.mxu0 0.0
      %1393 = vmatpush1.msra.mxu0 0.0
      %1394 = vmatprep.subr.mxu0 0.0
      %1395 = vmatpush1.msra.mxu0 0.0
      %1396 = vmatprep.subr.mxu0 0.0
      %1397 = vmatpush1.msra.mxu0 0.0
      %1398 = vmatprep.subr.mxu0 0.0
      %1399 = vmatpush1.msra.mxu0 0.0
      %1400 = vmatprep.subr.mxu0 0.0
      %1401 = vmatpush1.msra.mxu0 0.0
      %1402 = vmatprep.subr.mxu0 0.0
      %1403 = vmatpush1.msra.mxu0 0.0
      %1404 = vmatprep.subr.mxu0 0.0
      %1405 = vmatpush1.msra.mxu0 0.0
      %1406 = vmatprep.subr.mxu0 0.0
      %1407 = vmatpush1.msra.mxu0 0.0
      %1408 = vmatprep.subr.mxu0 0.0
      %1409 = vmatpush1.msra.mxu0 0.0
      %1410 = vmatprep.subr.mxu0 0.0
      %1411 = vmatpush1.msra.mxu0 0.0
      %1412 = vmatprep.subr.mxu0 0.0
      %1413 = vmatpush1.msra.mxu0 0.0
      %1414 = vmatprep.subr.mxu0 0.0
      %1415 = vmatpush1.msra.mxu0 0.0
      %1416 = vmatprep.mubr.f32.mxu0 0.0
      %1417 = vmatmul.mubr.f32.gmra.mrb[0].mxu0 %v1325
      %v1418 = vpop.f32.mrb[0].mxu0
      %v1419 = vadd.f32 0.0, %v1418
      %v1420 = vpop.f32.mrb[0].mxu0
      %1421 = vmatprep.mubr.f32.mxu0 0.0
      %1422 = vmatmul.mubr.f32.gmra.mrb[0].mxu0 %v1328
      %v1423 = vpop.f32.mrb[0].mxu0
      %v1424 = vadd.f32 0.0, %v1423
      %v1425 = vpop.f32.mrb[0].mxu0
      %1426 = vmatprep.mubr.f32.mxu0 0.0
      %1427 = vmatmul.mubr.f32.gmra.mrb[0].mxu0 %v1331
      %v1428 = vpop.f32.mrb[0].mxu0
      %v1429 = vadd.f32 0.0, %v1428
      %v1430 = vpop.f32.mrb[0].mxu0
      %1431 = vmatprep.mubr.f32.mxu0 0.0
      %1432 = vmatmul.mubr.f32.gmra.mrb[0].mxu0 %v1334
      %v1433 = vpop.f32.mrb[0].mxu0
      %v1434 = vadd.f32 0.0, %v1433
      %v1435 = vpop.f32.mrb[0].mxu0
      %1436 = vmatprep.mubr.f32.mxu0 0.0
      %1437 = vmatmul.mubr.f32.gmra.mrb[0].mxu0 %v1337
      %v1438 = vpop.f32.mrb[0].mxu0
      %v1439 = vadd.f32 0.0, %v1438
      %v1440 = vpop.f32.mrb[0].mxu0
      %1441 = vmatprep.mubr.f32.mxu0 0.0
      %1442 = vmatmul.mubr.f32.gmra.mrb[0].mxu0 %v1340
      %v1443 = vpop.f32.mrb[0].mxu0
      %v1444 = vadd.f32 0.0, %v1443
      %v1445 = vpop.f32.mrb[0].mxu0
      %1446 = vmatprep.mubr.f32.mxu0 0.0
      %1447 = vmatmul.mubr.f32.gmra.mrb[0].mxu0 %v1343
      %v1448 = vpop.f32.mrb[0].mxu0
      %v1449 = vadd.f32 0.0, %v1448
      %v1450 = vpop.f32.mrb[0].mxu0
      %1451 = vmatprep.mubr.f32.mxu0 0.0
      %1452 = vmatmul.mubr.f32.gmra.mrb[0].mxu0 %v1346
      %v1453 = vpop.f32.mrb[0].mxu0
      %v1454 = vadd.f32 0.0, %v1453
      %v1455 = vpop.f32.mrb[0].mxu0
      %1456 = vdwg.mxu0
      %s1457 = scalar_lea.vmem %s580, 256
      %1458 = vst.msk [vmem:[%s1457] sm:$0xff] %vm590, %v1419
      %1459 = vst.msk [vmem:[%s1457 + $0x8] sm:$0xff] %vm590, %v1424
      %1460 = vst.msk [vmem:[%s1457 + $0x10] sm:$0xff] %vm590, %v1429
      %1461 = vst.msk [vmem:[%s1457 + $0x18] sm:$0xff] %vm590, %v1434
      %1462 = vst.msk [vmem:[%s1457 + $0x20] sm:$0xff] %vm590, %v1439
      %1463 = vst.msk [vmem:[%s1457 + $0x28] sm:$0xff] %vm590, %v1444
      %1464 = vst.msk [vmem:[%s1457 + $0x30] sm:$0xff] %vm590, %v1449
      %1465 = vst.msk [vmem:[%s1457 + $0x38] sm:$0xff] %vm590, %v1454
      %s1466 = smul.u32 2, %s27
      %p1467 = scmp.lt.s32.totalorder %s26, 1
      %s1468 = scalar_select %p1467, %s26, 1
      %p1469 = scmp.lt.s32.totalorder %s1466, 1
      %s1470 = scalar_select %p1469, %s1466, 1
      %s1471 = smul.addr %s1468, 40
      %s1472 = sadd.s32 %s1470, %s1471
      %s1473 = smul.addr %s1472, 8
      %s1474 = scalar_lea.vmem %s11, %s1473
      // Predicated region
      $region65: #{tpu_custom_call.1} parent=63 // pred_check
        %p1475 = pneg %p329
      $region66: #{tpu_custom_call.1} parent=63 // pred_check_branch
        %1477 = sbr.rel (%p1475) target = $region68
      $region67: #{tpu_custom_call.1} parent=63 // pred_region
        %s1478 = smul.u32 2, %s27
      $region68: #{tpu_custom_call.1} parent=63 // pred_fallthru
        _
    $region64: #{tpu_custom_call.1} parent=5 // pred_fallthru
      _
    %p1479 = scmp.le.s32.totalorder 2, %s17
    // Predicated region
    $region69: #{tpu_custom_call.1} parent=5 // pred_check
      %p1480 = pneg %p1479
    $region70: #{tpu_custom_call.1} parent=5 // pred_check_branch
      %1482 = sbr.rel (%p1480) target = $region72
    $region71: #{tpu_custom_call.1} parent=5 // pred_region
      %s1483 = ssub.s32 %s17, 2
      // Predicated region
      $region73: #{tpu_custom_call.1} parent=71 // pred_check
        %p1484 = pneg %p335
      $region74: #{tpu_custom_call.1} parent=71 // pred_check_branch
        %1486 = sbr.rel (%p1484) target = $region76
      $region75: #{tpu_custom_call.1} parent=71 // pred_region
        %s1487 = smul.u32 2, %s29
        %p1488 = scmp.lt.s32.totalorder %s28, 1
        %s1489 = scalar_select %p1488, %s28, 1
        %p1490 = scmp.lt.s32.totalorder %s1487, 1
        %s1491 = scalar_select %p1490, %s1487, 1
        %s1492 = smul.addr %s1489, 40
        %s1493 = sadd.s32 %s1491, %s1492
        %s1494 = smul.addr %s1493, 8
        %s1495 = scalar_lea.vmem %s11, %s1494
      $region76: #{tpu_custom_call.1} parent=71 // pred_fallthru
        _
    $region72: #{tpu_custom_call.1} parent=5 // pred_fallthru
      _
  $region6: #{tpu_custom_call.1} parent=0 // loop_footer
    %s21 = sadd.s32 1, %s17
  $region7: #{tpu_custom_call.1} parent=0 // loop_footer_branch
    %16 = sbr.rel target = $region3
  $region8: #{tpu_custom_call.1} parent=0 // loop_exit
    _

</llo_original>
